<compile_context>
chip_gen: v6e
topology: v6e:2x2x1
jax: 0.10.0
libtpu: 0.0.40
codegen_flags: <defaults>
</compile_context>

<pallas_src>
import jax
import jax.numpy as jnp
from jax.experimental import pallas as pl
from jax.experimental.pallas import tpu as pltpu

EPS = 1e-5                       # BatchNorm2d / LayerNorm eps
EMB = 32                         # hdim / emb_dim
N_WAY, K_SPT, K_QRY = 4, 2, 2    # args.n_way / k_spt / k_qry
LOGIT_TEMP = 16.0                # args.temperature
ATTN_TEMP = float(EMB) ** 0.5    # ScaledDotProductAttention temperature
N_SPT = K_SPT * N_WAY            # 8 support images
N_QRY = K_QRY * N_WAY            # 8 query images
N_IMG = N_SPT + N_QRY            # 16 images per episode


# ----------------------------------------------------------------------------
# Single fused kernel: CNN backbone + FEAT head
# ----------------------------------------------------------------------------
def _feat_kernel(taps_ref, wbd_ref, b1t_ref, w2_ref, ep2_ref, w3_ref, b3_ref,
                 w4_ref, ep4_ref, wqkv_ref, wfc_ref, bfc_ref, lnw_ref, lnb_ref,
                 o_ref):
    # ---- CNN backbone -------------------------------------------------------
    # conv1 (1x1, Cin=3) + bias + ReLU for all 9 conv2 taps at once:
    # one block-diagonal MXU dot (4*N_IMG, 27) x (27, 576).  BN1 folded into w2.
    h = jnp.dot(taps_ref[...], wbd_ref[...], preferred_element_type=jnp.float32)
    h = jnp.maximum(h + b1t_ref[...], 0.0)

    # conv2 (3x3, s2) as ONE K=576 dot, then +bias(+BN1-shift term), ReLU, BN2.
    ep2 = ep2_ref[...]
    y2 = jnp.dot(h.astype(jnp.bfloat16), w2_ref[...],
                 preferred_element_type=jnp.float32)
    y2 = jnp.maximum(y2 + ep2[0:1, :], 0.0) * ep2[1:2, :] + ep2[2:3, :]

    # MaxPool(2,2,s2): rows are position-major, so pooled cell (0,0) (the only
    # one feeding the output) is 3 aligned (N_IMG, 64) slab maxes.
    pooled = jnp.maximum(
        jnp.maximum(y2[0:N_IMG, :], y2[N_IMG:2 * N_IMG, :]),
        jnp.maximum(y2[2 * N_IMG:3 * N_IMG, :], y2[3 * N_IMG:4 * N_IMG, :]))

    # conv3 (1x1, s2): only pooled cell (0,0) survives the downstream strides,
    # and it is already selected.  BN3 folded into w4/b4.
    y3 = jnp.dot(pooled.astype(jnp.bfloat16), w3_ref[...],
                 preferred_element_type=jnp.float32)
    y3 = jnp.maximum(y3 + b3_ref[...], 0.0)

    # conv4 (1x1, s2) -> 1x1 spatial; +bias, ReLU, BN4, flatten, final ReLU.
    ep4 = ep4_ref[...]
    y4 = jnp.dot(y3.astype(jnp.bfloat16), w4_ref[...],
                 preferred_element_type=jnp.float32)
    y4 = jnp.maximum(y4 + ep4[0:1, :], 0.0) * ep4[1:2, :] + ep4[2:3, :]
    emb = jnp.maximum(y4, 0.0)                          # (N_IMG, 32) embeddings

    # ---- FEAT head (eval) ---------------------------------------------------
    sup = emb[0:N_SPT, :]
    qry = emb[N_SPT:N_IMG, :]

    # prototypes: mean over shots (support rows are shot-major, matching
    # support.resize(1, k_spt, n_way, emb).mean(dim=1))
    proto = sup[0:N_WAY, :]
    for kk in range(1, K_SPT):
        proto = proto + sup[kk * N_WAY:(kk + 1) * N_WAY, :]
    proto = proto * (1.0 / K_SPT)                       # (n_way, 32)

    # single-head self-attention (batch=1, n_head=1): one fused q|k|v dot.
    qkv = jnp.dot(proto, wqkv_ref[...], preferred_element_type=jnp.float32)
    q = qkv[:, 0:EMB]
    k = qkv[:, EMB:2 * EMB]
    v = qkv[:, 2 * EMB:3 * EMB]
    s = jax.lax.dot_general(q, k, (((1,), (1,)), ((), ())),
                            preferred_element_type=jnp.float32) * (1.0 / ATTN_TEMP)
    s = jnp.exp(s - jnp.max(s, axis=-1, keepdims=True))
    attn = s / jnp.sum(s, axis=-1, keepdims=True)       # softmax (dropout: eval)
    out = jnp.dot(attn, v, preferred_element_type=jnp.float32)
    out = jnp.dot(out, wfc_ref[...],
                  preferred_element_type=jnp.float32) + bfc_ref[...]
    out = out + proto                                   # residual (dropout: eval)
    mu = jnp.mean(out, axis=-1, keepdims=True)
    var = jnp.mean((out - mu) ** 2, axis=-1, keepdims=True)
    proto_a = ((out - mu) * jax.lax.rsqrt(var + EPS)
               * lnw_ref[...] + lnb_ref[...])           # LayerNorm

    # euclidean logits via the dot expansion:
    #   -||q - p||^2 / T = -(||q||^2 - 2 q.p + ||p||^2) / T
    q_sq = jnp.sum(qry * qry, axis=-1, keepdims=True)            # (nq, 1)
    p_sq = jnp.sum(proto_a * proto_a, axis=-1, keepdims=True)    # (n_way, 1)
    cross = jax.lax.dot_general(qry, proto_a, (((1,), (1,)), ((), ())),
                                preferred_element_type=jnp.float32)
    ones_q = jnp.ones((N_QRY, 1), jnp.float32)
    p_sq_b = jax.lax.dot_general(ones_q, p_sq, (((1,), (1,)), ((), ())),
                                 preferred_element_type=jnp.float32)
    o_ref[...] = -(q_sq - 2.0 * cross + p_sq_b) * (1.0 / LOGIT_TEMP)


# ----------------------------------------------------------------------------
# Host-side parameter folding + tap gathering
# ----------------------------------------------------------------------------
def _bn_fold(p):
    scale = p["gamma"] * jax.lax.rsqrt(p["var"] + EPS)
    shift = p["beta"] - p["mean"] * scale
    return scale, shift


def _prep_constants(params):
    """Fold BN1->conv2 and BN3->conv4; build the block-diagonal conv1 weight and
    the fused q|k|v weight.  All tiny, fused by XLA into the pre-kernel graph."""
    p1, p2, p3, p4 = (params["conv1"], params["conv2"],
                      params["conv3"], params["conv4"])
    s1, sh1 = _bn_fold(p1)
    s2, sh2 = _bn_fold(p2)
    s3, sh3 = _bn_fold(p3)
    s4, sh4 = _bn_fold(p4)

    # conv1 as block-diagonal (27, 576): row = tap*3 + cin, col = tap*64 + cout.
    wbd = jnp.kron(jnp.eye(9, dtype=jnp.float32), p1["w"]).astype(jnp.bfloat16)
    b1t = jnp.tile(p1["b"], 9).reshape(1, 9 * 64).astype(jnp.float32)

    # conv2 with BN1 folded in: w2_eff[t,c,:] = w2[t,c,:]*s1[c];
    # b2_eff = b2 + sum_{t,c} w2[t,c,:]*sh1[c].
    w2e = (p2["w"] * s1[None, :, None]).reshape(9 * 64, 64).astype(jnp.bfloat16)
    b2e = p2["b"] + jnp.einsum("tco,c->o", p2["w"], sh1)
    ep2 = jnp.stack([b2e, s2, sh2], axis=0).astype(jnp.float32)      # (3, 64)

    w3 = p3["w"].astype(jnp.bfloat16)
    b3 = p3["b"].reshape(1, 32).astype(jnp.float32)

    # conv4 with BN3 folded in.
    w4e = (p4["w"] * s3[:, None]).astype(jnp.bfloat16)
    b4e = p4["b"] + jnp.einsum("co,c->o", p4["w"], sh3)
    ep4 = jnp.stack([b4e, s4, sh4], axis=0).astype(jnp.float32)      # (3, 32)

    a = params["attn"]
    wqkv = jnp.concatenate([a["wq"], a["wk"], a["wv"]], axis=1).astype(jnp.float32)
    wfc = a["wfc"].astype(jnp.float32)
    bfc = a["bfc"].reshape(1, EMB).astype(jnp.float32)
    lnw = a["ln_w"].reshape(1, EMB).astype(jnp.float32)
    lnb = a["ln_b"].reshape(1, EMB).astype(jnp.float32)
    return (wbd, b1t, w2e, ep2, w3, b3, w4e, ep4, wqkv, wfc, bfc, lnw, lnb)


def _gather_taps(x_nchw):
    """(N,3,16,16) -> (4*N, 27) taps for the ONLY 4 conv2 positions that reach
    the module output.  Rows are position-major (row = pos*N + img, pos in
    row-major {(0,0),(0,1),(1,0),(1,1)}); columns = (kh*3+kw)*3 + cin."""
    n = x_nchw.shape[0]
    x5 = x_nchw[:, :, :5, :5]                       # only the top-left 5x5 is used
    wins = jnp.stack([x5[:, :, 2 * oh:2 * oh + 3, 2 * ow:2 * ow + 3]
                      for oh in (0, 1) for ow in (0, 1)],
                     axis=0)                        # (4, N, 3, 3, 3) = (pos,img,cin,kh,kw)
    return jnp.transpose(wins, (0, 1, 3, 4, 2)).reshape(4 * n, 27)


def feat_forward(support_x, query_x, params):
    """FEAT.forward, mode='test', use_euclidean=True (inference semantics)."""
    assert support_x.shape == (N_SPT, 3, 16, 16), support_x.shape
    assert query_x.shape == (N_QRY, 3, 16, 16), query_x.shape
    x = jnp.concatenate([support_x, query_x], axis=0).astype(jnp.float32)
    taps = _gather_taps(x).astype(jnp.bfloat16)     # (4*N_IMG, 27)
    consts = _prep_constants(params)

    vm = pl.BlockSpec(memory_space=pltpu.MemorySpace.VMEM)
    return pl.pallas_call(
        _feat_kernel,
        out_shape=jax.ShapeDtypeStruct((N_QRY, N_WAY), jnp.float32),
        in_specs=[vm] * (1 + len(consts)),
        out_specs=vm,
    )(taps, *consts)
    # TODO(synk): mode='train' aux-task branch (batched attention over n_way
    # sequences + logits_reg) and dropout RNG are not implemented.


# ----------------------------------------------------------------------------
# Deterministic parameter construction
# ----------------------------------------------------------------------------
def make_params(key):
    # Conv weights stored directly in matmul layout:
    #   1x1 conv: (Cin, Cout)        == PyTorch (Cout,Cin,1,1) transposed
    #   3x3 conv: (kh*kw, Cin, Cout) == PyTorch (Cout,Cin,kh,kw) permuted to
    #                                   (kh,kw,Cin,Cout) then reshaped
    # Linear weights stored as (in, out) == PyTorch (out, in) transposed.
    def conv_block(k, shape_w, c_out):
        k1, k2, k3, k4, k5, k6 = jax.random.split(k, 6)
        return {
            "w": jax.random.normal(k1, shape_w, jnp.float32) * 0.1,
            "b": jax.random.normal(k2, (c_out,), jnp.float32) * 0.1,
            "gamma": 1.0 + 0.1 * jax.random.normal(k3, (c_out,), jnp.float32),
            "beta": 0.1 * jax.random.normal(k4, (c_out,), jnp.float32),
            "mean": 0.1 * jax.random.normal(k5, (c_out,), jnp.float32),
            "var": jnp.abs(jax.random.normal(k6, (c_out,), jnp.float32)) + 0.5,
        }

    ks = jax.random.split(key, 7)
    ka, kb, kc, kd = jax.random.split(ks[5], 4)
    sc = (2.0 / (EMB + EMB)) ** 0.5
    return {
        "conv1": conv_block(ks[0], (3, 64), 64),
        "conv2": conv_block(ks[1], (9, 64, 64), 64),
        "conv3": conv_block(ks[2], (64, 32), 32),
        "conv4": conv_block(ks[3], (32, 32), 32),
        # lin1 exists in the module but is never used in forward().
        "lin1_w": jax.random.normal(ks[4], (EMB, 4), jnp.float32) * 0.1,
        "lin1_b": jax.random.normal(ks[6], (4,), jnp.float32) * 0.1,
        "attn": {
            "wq": jax.random.normal(ka, (EMB, EMB), jnp.float32) * sc,
            "wk": jax.random.normal(kb, (EMB, EMB), jnp.float32) * sc,
            "wv": jax.random.normal(kc, (EMB, EMB), jnp.float32) * sc,
            "wfc": jax.random.normal(kd, (EMB, EMB), jnp.float32) * sc,
            "bfc": jnp.zeros((EMB,), jnp.float32),
            "ln_w": jnp.ones((EMB,), jnp.float32),
            "ln_b": jnp.zeros((EMB,), jnp.float32),
        },
    }


if __name__ == "__main__":
    key = jax.random.PRNGKey(0)
    ks, kq, kp = jax.random.split(key, 3)
    # PyTorch NCHW inputs: Support (k_spt*n_way, 3, 16, 16), Query (k_qry*n_way, 3, 16, 16)
    support = jax.random.normal(ks, (N_SPT, 3, 16, 16), jnp.float32)
    query = jax.random.normal(kq, (N_QRY, 3, 16, 16), jnp.float32)
    params = make_params(kp)

    logits = jax.jit(feat_forward)(support, query, params)
    logits = jax.block_until_ready(logits)
    assert logits.shape == (N_QRY, N_WAY), logits.shape
    assert bool(jnp.all(jnp.isfinite(logits)))
    print("KERNEL_OK")
</pallas_src>

<mosaic_0001>
module attributes {stable_mosaic.version = 11 : i64} {
  func.func @_feat_kernel(%arg0: memref<64x27xbf16, #tpu.memory_space<vmem>>, %arg1: memref<27x576xbf16, #tpu.memory_space<vmem>>, %arg2: memref<1x576xf32, #tpu.memory_space<vmem>>, %arg3: memref<576x64xbf16, #tpu.memory_space<vmem>>, %arg4: memref<3x64xf32, #tpu.memory_space<vmem>>, %arg5: memref<64x32xbf16, #tpu.memory_space<vmem>>, %arg6: memref<1x32xf32, #tpu.memory_space<vmem>>, %arg7: memref<32x32xbf16, #tpu.memory_space<vmem>>, %arg8: memref<3x32xf32, #tpu.memory_space<vmem>>, %arg9: memref<32x96xf32, #tpu.memory_space<vmem>>, %arg10: memref<32x32xf32, #tpu.memory_space<vmem>>, %arg11: memref<1x32xf32, #tpu.memory_space<vmem>>, %arg12: memref<1x32xf32, #tpu.memory_space<vmem>>, %arg13: memref<1x32xf32, #tpu.memory_space<vmem>>, %arg14: memref<8x4xf32, #tpu.memory_space<vmem>>) attributes {dimension_semantics = [], scalar_prefetch = 0 : i64, scratch_operands = 0 : i64, tpu.core_type = #tpu.core_type<tc>} {
    %c0 = arith.constant 0 : index
    %c0_0 = arith.constant 0 : index
    %0 = vector.load %arg0[%c0, %c0_0] : memref<64x27xbf16, #tpu.memory_space<vmem>>, vector<64x27xbf16>
    %c0_1 = arith.constant 0 : index
    %c0_2 = arith.constant 0 : index
    %1 = vector.load %arg1[%c0_1, %c0_2] : memref<27x576xbf16, #tpu.memory_space<vmem>>, vector<27x576xbf16>
    %cst = arith.constant dense<0.000000e+00> : vector<64x576xf32>
    %2 = tpu.matmul %0, %1, %cst {dimension_numbers = #tpu.dot_dimension_numbers<[1], [0], [0], [1], [0, 0, 1, 1], [], []>} : vector<64x27xbf16>, vector<27x576xbf16>, vector<64x576xf32> -> vector<64x576xf32>
    %c0_3 = arith.constant 0 : index
    %c0_4 = arith.constant 0 : index
    %3 = vector.load %arg2[%c0_3, %c0_4] : memref<1x576xf32, #tpu.memory_space<vmem>>, vector<1x576xf32>
    %4 = vector.broadcast %3 : vector<1x576xf32> to vector<64x576xf32>
    %5 = arith.addf %2, %4 : vector<64x576xf32>
    %cst_5 = arith.constant 0.000000e+00 : f32
    %6 = vector.broadcast %cst_5 : f32 to vector<64x576xf32>
    %7 = arith.maximumf %5, %6 : vector<64x576xf32>
    %c0_6 = arith.constant 0 : index
    %c0_7 = arith.constant 0 : index
    %8 = vector.load %arg4[%c0_6, %c0_7] : memref<3x64xf32, #tpu.memory_space<vmem>>, vector<3x64xf32>
    %9 = arith.truncf %7 : vector<64x576xf32> to vector<64x576xbf16>
    %c0_8 = arith.constant 0 : index
    %c0_9 = arith.constant 0 : index
    %10 = vector.load %arg3[%c0_8, %c0_9] : memref<576x64xbf16, #tpu.memory_space<vmem>>, vector<576x64xbf16>
    %cst_10 = arith.constant dense<0.000000e+00> : vector<64x64xf32>
    %11 = tpu.matmul %9, %10, %cst_10 {dimension_numbers = #tpu.dot_dimension_numbers<[1], [0], [0], [1], [0, 0, 1, 1], [], []>} : vector<64x576xbf16>, vector<576x64xbf16>, vector<64x64xf32> -> vector<64x64xf32>
    %12 = vector.extract_strided_slice %8 {offsets = [0, 0], sizes = [1, 64], strides = [1, 1]} : vector<3x64xf32> to vector<1x64xf32>
    %13 = vector.broadcast %12 : vector<1x64xf32> to vector<64x64xf32>
    %14 = arith.addf %11, %13 : vector<64x64xf32>
    %cst_11 = arith.constant 0.000000e+00 : f32
    %15 = vector.broadcast %cst_11 : f32 to vector<64x64xf32>
    %16 = arith.maximumf %14, %15 : vector<64x64xf32>
    %17 = vector.extract_strided_slice %8 {offsets = [1, 0], sizes = [1, 64], strides = [1, 1]} : vector<3x64xf32> to vector<1x64xf32>
    %18 = vector.broadcast %17 : vector<1x64xf32> to vector<64x64xf32>
    %19 = arith.mulf %16, %18 : vector<64x64xf32>
    %20 = vector.extract_strided_slice %8 {offsets = [2, 0], sizes = [1, 64], strides = [1, 1]} : vector<3x64xf32> to vector<1x64xf32>
    %21 = vector.broadcast %20 : vector<1x64xf32> to vector<64x64xf32>
    %22 = arith.addf %19, %21 : vector<64x64xf32>
    %23 = vector.extract_strided_slice %22 {offsets = [0, 0], sizes = [16, 64], strides = [1, 1]} : vector<64x64xf32> to vector<16x64xf32>
    %24 = vector.extract_strided_slice %22 {offsets = [16, 0], sizes = [16, 64], strides = [1, 1]} : vector<64x64xf32> to vector<16x64xf32>
    %25 = arith.maximumf %23, %24 : vector<16x64xf32>
    %26 = vector.extract_strided_slice %22 {offsets = [32, 0], sizes = [16, 64], strides = [1, 1]} : vector<64x64xf32> to vector<16x64xf32>
    %27 = vector.extract_strided_slice %22 {offsets = [48, 0], sizes = [16, 64], strides = [1, 1]} : vector<64x64xf32> to vector<16x64xf32>
    %28 = arith.maximumf %26, %27 : vector<16x64xf32>
    %29 = arith.maximumf %25, %28 : vector<16x64xf32>
    %30 = arith.truncf %29 : vector<16x64xf32> to vector<16x64xbf16>
    %c0_12 = arith.constant 0 : index
    %c0_13 = arith.constant 0 : index
    %31 = vector.load %arg5[%c0_12, %c0_13] : memref<64x32xbf16, #tpu.memory_space<vmem>>, vector<64x32xbf16>
    %cst_14 = arith.constant dense<0.000000e+00> : vector<16x32xf32>
    %32 = tpu.matmul %30, %31, %cst_14 {dimension_numbers = #tpu.dot_dimension_numbers<[1], [0], [0], [1], [0, 0, 1, 1], [], []>} : vector<16x64xbf16>, vector<64x32xbf16>, vector<16x32xf32> -> vector<16x32xf32>
    %c0_15 = arith.constant 0 : index
    %c0_16 = arith.constant 0 : index
    %33 = vector.load %arg6[%c0_15, %c0_16] : memref<1x32xf32, #tpu.memory_space<vmem>>, vector<1x32xf32>
    %34 = vector.broadcast %33 : vector<1x32xf32> to vector<16x32xf32>
    %35 = arith.addf %32, %34 : vector<16x32xf32>
    %cst_17 = arith.constant 0.000000e+00 : f32
    %36 = vector.broadcast %cst_17 : f32 to vector<16x32xf32>
    %37 = arith.maximumf %35, %36 : vector<16x32xf32>
    %c0_18 = arith.constant 0 : index
    %c0_19 = arith.constant 0 : index
    %38 = vector.load %arg8[%c0_18, %c0_19] : memref<3x32xf32, #tpu.memory_space<vmem>>, vector<3x32xf32>
    %39 = arith.truncf %37 : vector<16x32xf32> to vector<16x32xbf16>
    %c0_20 = arith.constant 0 : index
    %c0_21 = arith.constant 0 : index
    %40 = vector.load %arg7[%c0_20, %c0_21] : memref<32x32xbf16, #tpu.memory_space<vmem>>, vector<32x32xbf16>
    %cst_22 = arith.constant dense<0.000000e+00> : vector<16x32xf32>
    %41 = tpu.matmul %39, %40, %cst_22 {dimension_numbers = #tpu.dot_dimension_numbers<[1], [0], [0], [1], [0, 0, 1, 1], [], []>} : vector<16x32xbf16>, vector<32x32xbf16>, vector<16x32xf32> -> vector<16x32xf32>
    %42 = vector.extract_strided_slice %38 {offsets = [0, 0], sizes = [1, 32], strides = [1, 1]} : vector<3x32xf32> to vector<1x32xf32>
    %43 = vector.broadcast %42 : vector<1x32xf32> to vector<16x32xf32>
    %44 = arith.addf %41, %43 : vector<16x32xf32>
    %cst_23 = arith.constant 0.000000e+00 : f32
    %45 = vector.broadcast %cst_23 : f32 to vector<16x32xf32>
    %46 = arith.maximumf %44, %45 : vector<16x32xf32>
    %47 = vector.extract_strided_slice %38 {offsets = [1, 0], sizes = [1, 32], strides = [1, 1]} : vector<3x32xf32> to vector<1x32xf32>
    %48 = vector.broadcast %47 : vector<1x32xf32> to vector<16x32xf32>
    %49 = arith.mulf %46, %48 : vector<16x32xf32>
    %50 = vector.extract_strided_slice %38 {offsets = [2, 0], sizes = [1, 32], strides = [1, 1]} : vector<3x32xf32> to vector<1x32xf32>
    %51 = vector.broadcast %50 : vector<1x32xf32> to vector<16x32xf32>
    %52 = arith.addf %49, %51 : vector<16x32xf32>
    %cst_24 = arith.constant 0.000000e+00 : f32
    %53 = vector.broadcast %cst_24 : f32 to vector<16x32xf32>
    %54 = arith.maximumf %52, %53 : vector<16x32xf32>
    %55 = vector.extract_strided_slice %54 {offsets = [0, 0], sizes = [8, 32], strides = [1, 1]} : vector<16x32xf32> to vector<8x32xf32>
    %56 = vector.extract_strided_slice %54 {offsets = [8, 0], sizes = [8, 32], strides = [1, 1]} : vector<16x32xf32> to vector<8x32xf32>
    %57 = vector.extract_strided_slice %55 {offsets = [0, 0], sizes = [4, 32], strides = [1, 1]} : vector<8x32xf32> to vector<4x32xf32>
    %58 = vector.extract_strided_slice %55 {offsets = [4, 0], sizes = [4, 32], strides = [1, 1]} : vector<8x32xf32> to vector<4x32xf32>
    %59 = arith.addf %57, %58 : vector<4x32xf32>
    %cst_25 = arith.constant 5.000000e-01 : f32
    %60 = vector.broadcast %cst_25 : f32 to vector<4x32xf32>
    %61 = arith.mulf %59, %60 : vector<4x32xf32>
    %c0_26 = arith.constant 0 : index
    %c0_27 = arith.constant 0 : index
    %62 = vector.load %arg9[%c0_26, %c0_27] : memref<32x96xf32, #tpu.memory_space<vmem>>, vector<32x96xf32>
    %cst_28 = arith.constant dense<0.000000e+00> : vector<4x96xf32>
    %63 = tpu.matmul %61, %62, %cst_28 {dimension_numbers = #tpu.dot_dimension_numbers<[1], [0], [0], [1], [0, 0, 1, 1], [], []>} : vector<4x32xf32>, vector<32x96xf32>, vector<4x96xf32> -> vector<4x96xf32>
    %64 = vector.extract_strided_slice %63 {offsets = [0, 0], sizes = [4, 32], strides = [1, 1]} : vector<4x96xf32> to vector<4x32xf32>
    %65 = vector.extract_strided_slice %63 {offsets = [0, 32], sizes = [4, 32], strides = [1, 1]} : vector<4x96xf32> to vector<4x32xf32>
    %66 = vector.extract_strided_slice %63 {offsets = [0, 64], sizes = [4, 32], strides = [1, 1]} : vector<4x96xf32> to vector<4x32xf32>
    %cst_29 = arith.constant dense<0.000000e+00> : vector<4x4xf32>
    %67 = tpu.matmul %64, %65, %cst_29 {dimension_numbers = #tpu.dot_dimension_numbers<[1], [1], [0], [0], [0, 0, 1, 0], [], []>} : vector<4x32xf32>, vector<4x32xf32>, vector<4x4xf32> -> vector<4x4xf32>
    %cst_30 = arith.constant 0.176776692 : f32
    %68 = vector.broadcast %cst_30 : f32 to vector<4x4xf32>
    %69 = arith.mulf %67, %68 : vector<4x4xf32>
    %cst_31 = arith.constant dense<0xFF800000> : vector<4xf32>
    %70 = vector.multi_reduction <maximumf>, %69, %cst_31 [1] : vector<4x4xf32> to vector<4xf32>
    %71 = vector.shape_cast %70 : vector<4xf32> to vector<4x1xf32>
    %72 = vector.broadcast %71 : vector<4x1xf32> to vector<4x4xf32>
    %73 = arith.subf %69, %72 : vector<4x4xf32>
    %74 = math.exp %73 : vector<4x4xf32>
    %cst_32 = arith.constant dense<0.000000e+00> : vector<4xf32>
    %75 = vector.multi_reduction <add>, %74, %cst_32 [1] : vector<4x4xf32> to vector<4xf32>
    %76 = vector.shape_cast %75 : vector<4xf32> to vector<4x1xf32>
    %77 = vector.broadcast %76 : vector<4x1xf32> to vector<4x4xf32>
    %78 = arith.divf %74, %77 : vector<4x4xf32>
    %cst_33 = arith.constant dense<0.000000e+00> : vector<4x32xf32>
    %79 = tpu.matmul %78, %66, %cst_33 {dimension_numbers = #tpu.dot_dimension_numbers<[1], [0], [0], [1], [0, 0, 1, 1], [], []>} : vector<4x4xf32>, vector<4x32xf32>, vector<4x32xf32> -> vector<4x32xf32>
    %c0_34 = arith.constant 0 : index
    %c0_35 = arith.constant 0 : index
    %80 = vector.load %arg10[%c0_34, %c0_35] : memref<32x32xf32, #tpu.memory_space<vmem>>, vector<32x32xf32>
    %cst_36 = arith.constant dense<0.000000e+00> : vector<4x32xf32>
    %81 = tpu.matmul %79, %80, %cst_36 {dimension_numbers = #tpu.dot_dimension_numbers<[1], [0], [0], [1], [0, 0, 1, 1], [], []>} : vector<4x32xf32>, vector<32x32xf32>, vector<4x32xf32> -> vector<4x32xf32>
    %c0_37 = arith.constant 0 : index
    %c0_38 = arith.constant 0 : index
    %82 = vector.load %arg11[%c0_37, %c0_38] : memref<1x32xf32, #tpu.memory_space<vmem>>, vector<1x32xf32>
    %83 = vector.broadcast %82 : vector<1x32xf32> to vector<4x32xf32>
    %84 = arith.addf %81, %83 : vector<4x32xf32>
    %85 = arith.addf %84, %61 : vector<4x32xf32>
    %cst_39 = arith.constant dense<0.000000e+00> : vector<4xf32>
    %86 = vector.multi_reduction <add>, %85, %cst_39 [1] : vector<4x32xf32> to vector<4xf32>
    %87 = vector.shape_cast %86 : vector<4xf32> to vector<4x1xf32>
    %cst_40 = arith.constant 3.200000e+01 : f32
    %88 = vector.broadcast %cst_40 : f32 to vector<4x1xf32>
    %89 = arith.divf %87, %88 : vector<4x1xf32>
    %90 = vector.broadcast %89 : vector<4x1xf32> to vector<4x32xf32>
    %91 = arith.subf %85, %90 : vector<4x32xf32>
    %92 = arith.mulf %91, %91 : vector<4x32xf32>
    %cst_41 = arith.constant dense<0.000000e+00> : vector<4xf32>
    %93 = vector.multi_reduction <add>, %92, %cst_41 [1] : vector<4x32xf32> to vector<4xf32>
    %94 = vector.shape_cast %93 : vector<4xf32> to vector<4x1xf32>
    %cst_42 = arith.constant 3.200000e+01 : f32
    %95 = vector.broadcast %cst_42 : f32 to vector<4x1xf32>
    %96 = arith.divf %94, %95 : vector<4x1xf32>
    %97 = vector.broadcast %89 : vector<4x1xf32> to vector<4x32xf32>
    %98 = arith.subf %85, %97 : vector<4x32xf32>
    %cst_43 = arith.constant 9.99999974E-6 : f32
    %99 = vector.broadcast %cst_43 : f32 to vector<4x1xf32>
    %100 = arith.addf %96, %99 : vector<4x1xf32>
    %101 = math.rsqrt %100 : vector<4x1xf32>
    %102 = vector.broadcast %101 : vector<4x1xf32> to vector<4x32xf32>
    %103 = arith.mulf %98, %102 : vector<4x32xf32>
    %c0_44 = arith.constant 0 : index
    %c0_45 = arith.constant 0 : index
    %104 = vector.load %arg12[%c0_44, %c0_45] : memref<1x32xf32, #tpu.memory_space<vmem>>, vector<1x32xf32>
    %105 = vector.broadcast %104 : vector<1x32xf32> to vector<4x32xf32>
    %106 = arith.mulf %103, %105 : vector<4x32xf32>
    %c0_46 = arith.constant 0 : index
    %c0_47 = arith.constant 0 : index
    %107 = vector.load %arg13[%c0_46, %c0_47] : memref<1x32xf32, #tpu.memory_space<vmem>>, vector<1x32xf32>
    %108 = vector.broadcast %107 : vector<1x32xf32> to vector<4x32xf32>
    %109 = arith.addf %106, %108 : vector<4x32xf32>
    %110 = arith.mulf %56, %56 : vector<8x32xf32>
    %cst_48 = arith.constant dense<0.000000e+00> : vector<8xf32>
    %111 = vector.multi_reduction <add>, %110, %cst_48 [1] : vector<8x32xf32> to vector<8xf32>
    %112 = vector.shape_cast %111 : vector<8xf32> to vector<8x1xf32>
    %113 = arith.mulf %109, %109 : vector<4x32xf32>
    %cst_49 = arith.constant dense<0.000000e+00> : vector<4xf32>
    %114 = vector.multi_reduction <add>, %113, %cst_49 [1] : vector<4x32xf32> to vector<4xf32>
    %115 = vector.shape_cast %114 : vector<4xf32> to vector<4x1xf32>
    %cst_50 = arith.constant dense<0.000000e+00> : vector<8x4xf32>
    %116 = tpu.matmul %56, %109, %cst_50 {dimension_numbers = #tpu.dot_dimension_numbers<[1], [1], [0], [0], [0, 0, 1, 0], [], []>} : vector<8x32xf32>, vector<4x32xf32>, vector<8x4xf32> -> vector<8x4xf32>
    %cst_51 = arith.constant 1.000000e+00 : f32
    %117 = vector.broadcast %cst_51 : f32 to vector<8x1xf32>
    %cst_52 = arith.constant dense<0.000000e+00> : vector<8x4xf32>
    %118 = tpu.matmul %117, %115, %cst_52 {dimension_numbers = #tpu.dot_dimension_numbers<[1], [1], [0], [0], [0, 0, 1, 0], [], []>} : vector<8x1xf32>, vector<4x1xf32>, vector<8x4xf32> -> vector<8x4xf32>
    %cst_53 = arith.constant 2.000000e+00 : f32
    %119 = vector.broadcast %cst_53 : f32 to vector<8x4xf32>
    %120 = arith.mulf %119, %116 : vector<8x4xf32>
    %121 = vector.broadcast %112 : vector<8x1xf32> to vector<8x4xf32>
    %122 = arith.subf %121, %120 : vector<8x4xf32>
    %123 = arith.addf %122, %118 : vector<8x4xf32>
    %cst_54 = arith.constant 0.000000e+00 : f32
    %124 = vector.broadcast %cst_54 : f32 to vector<8x4xf32>
    %125 = arith.subf %124, %123 : vector<8x4xf32>
    %cst_55 = arith.constant 6.250000e-02 : f32
    %126 = vector.broadcast %cst_55 : f32 to vector<8x4xf32>
    %127 = arith.mulf %125, %126 : vector<8x4xf32>
    %c0_56 = arith.constant 0 : index
    %c0_57 = arith.constant 0 : index
    %128 = vector.load %arg14[%c0_56, %c0_57] : memref<8x4xf32, #tpu.memory_space<vmem>>, vector<8x4xf32>
    tpu.vector_store %arg14[%c0_56, %c0_57], %127 {strides = array<i32>} : memref<8x4xf32, #tpu.memory_space<vmem>>, vector<8x4xf32>,
    return
  }
}

</mosaic_0001>

<llo_original>
// kernel: tile.8
$region0: #{tile.8}
  #allocation0 [shape = 's32[1]{0}', space=sflag, size = 0x4, scoped, tag = 'scoped memory for tile.8']
  %s0 = inlined_call_operand.vmem [shape: f32[64], index: 0, kind: input, shape index: {}]
  %s1 = inlined_call_operand.vmem [shape: f32[9,64], index: 1, kind: output, shape index: {}]
  // Predicated region
  $region2: #{tile.8} parent=0 // pred_check
    _
  $region3: #{tile.8} parent=0 // pred_check_branch
    %3 = sbr.rel (0) target = $region5
  $region4: #{tile.8} parent=0 // pred_region
    _
  $region5: #{tile.8} parent=0 // pred_fallthru
    _
  %v4 = vld [vmem:[%s0] ss:$0 sm:$0xff]
  %5 = vst [vmem:[%s1] sm:$0xff] %v4
  %s6 = scalar_lea.vmem %s1, 8
  %7 = vst [vmem:[%s6] sm:$0xff] %v4

// kernel: tile.9
$region0: #{tile.9}
  %s0 = inlined_call_operand.vmem [shape: f32[9,64], index: 0, kind: input, shape index: {}]
  %s1 = inlined_call_operand.vmem [shape: f32[1,576], index: 1, kind: output, shape index: {}]
  $region1: #{tile.9} parent=0
    #allocation0 [shape = 'u8[20480]{0}', space=vmem, size = 0x5000, scoped, tag = 'scoped mem for output reshape']
    %v2 = vld [vmem:[%s0] ss:$2 sm:$0x1f]
    %vm3 = vcmask 523264
    %4 = vst.msk [vmem:[#allocation0] ss:$8 sm:$0xf] %vm3, %v2
    %s5 = scalar_lea.vmem [#allocation0], 28
    %6 = vst.msk [vmem:[%s5] sm:$0x10] %vm3, %v2
    %s7 = scalar_lea.vmem %s0, 1
    %v8 = vld [vmem:[%s7] ss:$2 sm:$0xf]
    %9 = vrot.lane.b32.xlu0 %v8, 64
    %v10 = vpop.permute.xlu0 %9
    %vm11 = vcmask 1048064
    %12 = vst.msk [vmem:[#allocation0] ss:$8 sm:$0xf] %vm11, %v10
    %s14 = sshll.u32 1, 1
    %s15 = ssub.s32 %s14, 1
    %v17 = vld [vmem:[#allocation0] sm:%s15]
    %s18 = sshll.u32 1, 1
    %s19 = ssub.s32 %s18, 1
    %20 = vst [vmem:[%s1] sm:%s19] %v17
    %s21 = scalar_lea.vmem [#allocation0], 8
    %v22 = vld [vmem:[%s21] sm:%s15]
    %s23 = sshll.u32 1, 1
    %s24 = ssub.s32 %s23, 1
    %s25 = scalar_lea.vmem %s1, 1
    %26 = vst [vmem:[%s25] sm:%s24] %v22
    %s27 = scalar_lea.vmem [#allocation0], 16
    %v28 = vld [vmem:[%s27] sm:%s15]
    %s29 = sshll.u32 1, 1
    %s30 = ssub.s32 %s29, 1
    %s31 = smul.addr 1, 2
    %s32 = scalar_lea.vmem %s1, %s31
    %33 = vst [vmem:[%s32] sm:%s30] %v28
    %s34 = scalar_lea.vmem [#allocation0], 24
    %v35 = vld [vmem:[%s34] sm:%s15]
    %s36 = sshll.u32 1, 1
    %s37 = ssub.s32 %s36, 1
    %s38 = smul.addr 1, 3
    %s39 = scalar_lea.vmem %s1, %s38
    %40 = vst [vmem:[%s39] sm:%s37] %v35
    %s41 = scalar_lea.vmem [#allocation0], 32
    %v42 = vld [vmem:[%s41] sm:%s15]
    %s43 = sshll.u32 1, 1
    %s44 = ssub.s32 %s43, 1
    %s45 = smul.addr 1, 4
    %s46 = scalar_lea.vmem %s1, %s45
    %47 = vst [vmem:[%s46] sm:%s44] %v42

// kernel: feat_forward.1
$region0: #{feat_forward.1}
  #allocation0 [shape = 'u32[]', space=smem, size = 0x4, offset = 0x4, fixed_abs, tag = 'smem constant byte address 0x4 - core index']
  #allocation1 [shape = 'u32[144,128]{1,0:T(1,128)}', space=vmem, size = 0x12000, scoped, tag = 'internal scratch']
  %s0 = inlined_call_operand.vmem [shape: bf16[64,27], index: 0, kind: input, shape index: {}]
  %s1 = inlined_call_operand.vmem [shape: bf16[27,576], index: 1, kind: input, shape index: {}]
  %s2 = inlined_call_operand.vmem [shape: f32[1,576], index: 2, kind: input, shape index: {}]
  %s3 = inlined_call_operand.vmem [shape: bf16[576,64], index: 3, kind: input, shape index: {}]
  %s4 = inlined_call_operand.vmem [shape: f32[3,64], index: 4, kind: input, shape index: {}]
  %s5 = inlined_call_operand.vmem [shape: bf16[64,32], index: 5, kind: input, shape index: {}]
  %s6 = inlined_call_operand.vmem [shape: f32[1,32], index: 6, kind: input, shape index: {}]
  %s7 = inlined_call_operand.vmem [shape: bf16[32,32], index: 7, kind: input, shape index: {}]
  %s8 = inlined_call_operand.vmem [shape: f32[3,32], index: 8, kind: input, shape index: {}]
  %s9 = inlined_call_operand.vmem [shape: f32[32,96], index: 9, kind: input, shape index: {}]
  %s10 = inlined_call_operand.vmem [shape: f32[32,32], index: 10, kind: input, shape index: {}]
  %s11 = inlined_call_operand.vmem [shape: f32[1,32], index: 11, kind: input, shape index: {}]
  %s12 = inlined_call_operand.vmem [shape: f32[1,32], index: 12, kind: input, shape index: {}]
  %s13 = inlined_call_operand.vmem [shape: f32[1,32], index: 13, kind: input, shape index: {}]
  %s14 = inlined_call_operand.vmem [shape: f32[8,4], index: 14, kind: output, shape index: {}]
  %s15 = sld [smem:[#allocation0]]
  $region66: #{feat_forward.1} parent=0
    _
  %s17 = ssub.s32 1, %s15
  %s18 = scalar_select 0, %s17, %s15
  // Predicated region
  $region2: #{feat_forward.1} parent=0 // pred_check
    _
  $region3: #{feat_forward.1} parent=0 // pred_check_branch
    %20 = sbr.rel (0) target = $region5
  $region4: #{feat_forward.1} parent=0 // pred_region
    _
  $region5: #{feat_forward.1} parent=0 // pred_fallthru
    _
  // Predicated region
  $region6: #{feat_forward.1} parent=0 // pred_check
    _
  $region7: #{feat_forward.1} parent=0 // pred_check_branch
    %22 = sbr.rel (0) target = $region9
  $region8: #{feat_forward.1} parent=0 // pred_region
    _
  $region9: #{feat_forward.1} parent=0 // pred_fallthru
    _
  // Predicated region
  $region10: #{feat_forward.1} parent=0 // pred_check
    _
  $region11: #{feat_forward.1} parent=0 // pred_check_branch
    %24 = sbr.rel (0) target = $region13
  $region12: #{feat_forward.1} parent=0 // pred_region
    _
  $region13: #{feat_forward.1} parent=0 // pred_fallthru
    _
  // Predicated region
  $region14: #{feat_forward.1} parent=0 // pred_check
    _
  $region15: #{feat_forward.1} parent=0 // pred_check_branch
    %26 = sbr.rel (0) target = $region17
  $region16: #{feat_forward.1} parent=0 // pred_region
    _
  $region17: #{feat_forward.1} parent=0 // pred_fallthru
    _
  // Predicated region
  $region18: #{feat_forward.1} parent=0 // pred_check
    _
  $region19: #{feat_forward.1} parent=0 // pred_check_branch
    %28 = sbr.rel (0) target = $region21
  $region20: #{feat_forward.1} parent=0 // pred_region
    _
  $region21: #{feat_forward.1} parent=0 // pred_fallthru
    _
  // Predicated region
  $region22: #{feat_forward.1} parent=0 // pred_check
    _
  $region23: #{feat_forward.1} parent=0 // pred_check_branch
    %30 = sbr.rel (0) target = $region25
  $region24: #{feat_forward.1} parent=0 // pred_region
    _
  $region25: #{feat_forward.1} parent=0 // pred_fallthru
    _
  // Predicated region
  $region26: #{feat_forward.1} parent=0 // pred_check
    _
  $region27: #{feat_forward.1} parent=0 // pred_check_branch
    %32 = sbr.rel (0) target = $region29
  $region28: #{feat_forward.1} parent=0 // pred_region
    _
  $region29: #{feat_forward.1} parent=0 // pred_fallthru
    _
  // Predicated region
  $region30: #{feat_forward.1} parent=0 // pred_check
    _
  $region31: #{feat_forward.1} parent=0 // pred_check_branch
    %34 = sbr.rel (0) target = $region33
  $region32: #{feat_forward.1} parent=0 // pred_region
    _
  $region33: #{feat_forward.1} parent=0 // pred_fallthru
    _
  // Predicated region
  $region34: #{feat_forward.1} parent=0 // pred_check
    _
  $region35: #{feat_forward.1} parent=0 // pred_check_branch
    %36 = sbr.rel (0) target = $region37
  $region36: #{feat_forward.1} parent=0 // pred_region
    _
  $region37: #{feat_forward.1} parent=0 // pred_fallthru
    _
  // Predicated region
  $region38: #{feat_forward.1} parent=0 // pred_check
    _
  $region39: #{feat_forward.1} parent=0 // pred_check_branch
    %38 = sbr.rel (0) target = $region41
  $region40: #{feat_forward.1} parent=0 // pred_region
    _
  $region41: #{feat_forward.1} parent=0 // pred_fallthru
    _
  // Predicated region
  $region42: #{feat_forward.1} parent=0 // pred_check
    _
  $region43: #{feat_forward.1} parent=0 // pred_check_branch
    %40 = sbr.rel (0) target = $region45
  $region44: #{feat_forward.1} parent=0 // pred_region
    _
  $region45: #{feat_forward.1} parent=0 // pred_fallthru
    _
  // Predicated region
  $region46: #{feat_forward.1} parent=0 // pred_check
    _
  $region47: #{feat_forward.1} parent=0 // pred_check_branch
    %42 = sbr.rel (0) target = $region49
  $region48: #{feat_forward.1} parent=0 // pred_region
    _
  $region49: #{feat_forward.1} parent=0 // pred_fallthru
    _
  // Predicated region
  $region50: #{feat_forward.1} parent=0 // pred_check
    _
  $region51: #{feat_forward.1} parent=0 // pred_check_branch
    %44 = sbr.rel (0) target = $region53
  $region52: #{feat_forward.1} parent=0 // pred_region
    _
  $region53: #{feat_forward.1} parent=0 // pred_fallthru
    _
  // Predicated region
  $region54: #{feat_forward.1} parent=0 // pred_check
    _
  $region55: #{feat_forward.1} parent=0 // pred_check_branch
    %46 = sbr.rel (0) target = $region57
  $region56: #{feat_forward.1} parent=0 // pred_region
    _
  $region57: #{feat_forward.1} parent=0 // pred_fallthru
    _
  %v48 = vld [vmem:[%s0] sm:$0xf]
  %v49 = vld [vmem:[%s0 + $0x4] sm:$0xf]
  %v50 = vld [vmem:[%s0 + $0x8] sm:$0xf]
  %v51 = vld [vmem:[%s0 + $0xc] sm:$0xf]
  %v52 = vld [vmem:[%s0 + $0x10] sm:$0xf]
  %v53 = vld [vmem:[%s0 + $0x14] sm:$0xf]
  %v54 = vld [vmem:[%s0 + $0x18] sm:$0xf]
  %v55 = vld [vmem:[%s0 + $0x1c] sm:$0xf]
  %v56 = vld [vmem:[%s1] sm:$0xff]
  %v57 = vld [vmem:[%s1 + $0x8] sm:$0xff]
  %v58 = vld [vmem:[%s1 + $0x10] sm:$0xf]
  %v59 = vld [vmem:[%s1 + $0x14] sm:$0xff]
  %v60 = vld [vmem:[%s1 + $0x1c] sm:$0xff]
  %v61 = vld [vmem:[%s1 + $0x24] sm:$0xf]
  %v62 = vld [vmem:[%s1 + $0x28] sm:$0xff]
  %v63 = vld [vmem:[%s1 + $0x30] sm:$0xff]
  %v64 = vld [vmem:[%s1 + $0x38] sm:$0xf]
  %v65 = vld [vmem:[%s1 + $0x3c] sm:$0x33]
  %v66 = vld [vmem:[%s1 + $0x44] sm:$0x33]
  %v67 = vld [vmem:[%s1 + $0x4c] sm:$0x3]
  %v68 = vld [vmem:[%s2] sm:$0x1f]
  %v70 = vlaneseq
  %v71 = vshrl.u32 %v70, 7
  %v72 = vsub.s32 0, %v71
  %v73 = vrot.slane %v68, %v72
  %v74 = vlaneseq
  %v75 = vshrl.u32 %v74, 7
  %v76 = vsub.s32 1, %v75
  %v77 = vrot.slane %v68, %v76
  %v78 = vlaneseq
  %v79 = vshrl.u32 %v78, 7
  %v80 = vsub.s32 2, %v79
  %v81 = vrot.slane %v68, %v80
  %v82 = vlaneseq
  %v83 = vshrl.u32 %v82, 7
  %v84 = vsub.s32 3, %v83
  %v85 = vrot.slane %v68, %v84
  %v86 = vlaneseq
  %v87 = vshrl.u32 %v86, 7
  %v88 = vsub.s32 4, %v87
  %v89 = vrot.slane %v68, %v88
  %v103 = vunpack.c.l.b16 %v48
  %v104 = vunpack.c.l.b16 %v49
  %v105 = vunpack.c.l.b16 %v50
  %v106 = vunpack.c.l.b16 %v51
  %v107 = vunpack.c.l.b16 %v52
  %v108 = vunpack.c.l.b16 %v53
  %v109 = vunpack.c.l.b16 %v54
  %v110 = vunpack.c.l.b16 %v55
  %v111 = vpack.c.b16 %v104, %v103
  %v112 = vpack.c.b16 %v106, %v105
  %v113 = vpack.c.b16 %v108, %v107
  %v114 = vpack.c.b16 %v110, %v109
  %v127 = vunpack.c.l.b16 %v56
  %v128 = vunpack.c.h.b16 %v56
  %v129 = vunpack.c.l.b16 %v57
  %v130 = vunpack.c.h.b16 %v57
  %v131 = vunpack.c.l.b16 %v58
  %v132 = vunpack.c.l.b16 %v59
  %v133 = vunpack.c.h.b16 %v59
  %v134 = vunpack.c.l.b16 %v60
  %v135 = vunpack.c.h.b16 %v60
  %v136 = vunpack.c.l.b16 %v61
  %v137 = vunpack.c.l.b16 %v62
  %v138 = vunpack.c.h.b16 %v62
  %v139 = vunpack.c.l.b16 %v63
  %v140 = vunpack.c.h.b16 %v63
  %v141 = vunpack.c.l.b16 %v64
  %v142 = vunpack.c.l.b16 %v65
  %v143 = vunpack.c.h.b16 %v65
  %v144 = vunpack.c.l.b16 %v66
  %v145 = vunpack.c.h.b16 %v66
  %v146 = vunpack.c.l.b16 %v67
  %v147 = vpack.c.b16 %v132, %v127
  %v148 = vpack.c.b16 %v133, %v128
  %v149 = vpack.c.b16 %v134, %v129
  %v150 = vpack.c.b16 %v135, %v130
  %v151 = vpack.c.b16 %v136, %v131
  %v152 = vpack.c.b16 %v142, %v137
  %v153 = vpack.c.b16 %v143, %v138
  %v154 = vpack.c.b16 %v144, %v139
  %v155 = vpack.c.b16 %v145, %v140
  %v156 = vpack.c.b16 %v146, %v141
  %vm162 = vcmask 220160
  %v164 = vsel %vm162, %v111, 0
  %v167 = vsel %vm162, %v112, 0
  %v170 = vsel %vm162, %v113, 0
  %v173 = vsel %vm162, %v114, 0
  %vm175 = vcmask 1044480
  %vm176 = vcmask 1045504
  %v177 = vsel %vm175, 4294967295, 65535
  %v178 = vsel %vm176, %v177, 0
  %v180 = vand.u32 %v152, %v178
  %v183 = vand.u32 %v153, %v178
  %v186 = vand.u32 %v154, %v178
  %v189 = vand.u32 %v155, %v178
  %v192 = vand.u32 %v156, %v178
  %194 = vmatprep.subr.bf16.mxu0 0
  %195 = vmatpush1.bf16.msra.mxu0 0
  %196 = vmatprep.subr.bf16.mxu0 0
  %197 = vmatpush1.bf16.msra.mxu0 0
  %198 = vmatprep.subr.bf16.mxu0 0
  %199 = vmatpush1.bf16.msra.mxu0 0
  %200 = vmatprep.subr.bf16.mxu0 0
  %201 = vmatpush1.bf16.msra.mxu0 0
  %202 = vmatprep.subr.bf16.mxu0 0
  %203 = vmatpush1.bf16.msra.mxu0 0
  %204 = vmatprep.subr.bf16.mxu0 0
  %205 = vmatpush1.bf16.msra.mxu0 0
  %206 = vmatprep.subr.bf16.mxu0 %v183
  %207 = vmatpush1.bf16.msra.mxu0 %v180
  %208 = vmatprep.subr.bf16.mxu0 %v148
  %209 = vmatpush1.bf16.msra.mxu0 %v147
  %210 = vmatprep.subr.bf16.mxu0 0
  %211 = vmatpush2.bf16.msra.mxu0 0
  %212 = vmatprep.subr.bf16.mxu0 0
  %213 = vmatpush2.bf16.msra.mxu0 0
  %214 = vmatprep.subr.bf16.mxu0 0
  %215 = vmatpush2.bf16.msra.mxu0 0
  %216 = vmatprep.subr.bf16.mxu0 0
  %217 = vmatpush2.bf16.msra.mxu0 0
  %218 = vmatprep.subr.bf16.mxu0 0
  %219 = vmatpush2.bf16.msra.mxu0 0
  %220 = vmatprep.subr.bf16.mxu0 0
  %221 = vmatpush2.bf16.msra.mxu0 0
  %222 = vmatprep.subr.bf16.mxu0 0
  %223 = vmatpush2.bf16.msra.mxu0 0
  %224 = vmatprep.subr.bf16.mxu0 0
  %225 = vmatpush2.bf16.msra.mxu0 0
  %226 = vmatprep.mubr.bf16.mxu0 0
  %227 = vmatmul.mubr.bf16.gmra.mxu0 %v164
  %v228 = vpop.f32.mrf.mxu0
  %v229 = vadd.f32 %v73, %v228
  %v230 = vpop.f32.mrf.mxu0
  %v231 = vadd.f32 %v77, %v230
  %v232 = vpop.f32.mrf.mxu0
  %v233 = vadd.f32 %v73, %v232
  %v234 = vpop.f32.mrf.mxu0
  %v235 = vadd.f32 %v77, %v234
  %236 = vmatprep.mubr.bf16.mxu0 0
  %237 = vmatmul.mubr.bf16.gmra.mxu0 %v167
  %v238 = vpop.f32.mrf.mxu0
  %v239 = vadd.f32 %v73, %v238
  %v240 = vpop.f32.mrf.mxu0
  %v241 = vadd.f32 %v77, %v240
  %v242 = vpop.f32.mrf.mxu0
  %v243 = vadd.f32 %v73, %v242
  %v244 = vpop.f32.mrf.mxu0
  %v245 = vadd.f32 %v77, %v244
  %246 = vmatprep.mubr.bf16.mxu0 0
  %247 = vmatmul.mubr.bf16.gmra.mxu0 %v170
  %v248 = vpop.f32.mrf.mxu0
  %v249 = vadd.f32 %v73, %v248
  %v250 = vpop.f32.mrf.mxu0
  %v251 = vadd.f32 %v77, %v250
  %v252 = vpop.f32.mrf.mxu0
  %v253 = vadd.f32 %v73, %v252
  %v254 = vpop.f32.mrf.mxu0
  %v255 = vadd.f32 %v77, %v254
  %256 = vmatprep.mubr.bf16.mxu0 0
  %257 = vmatmul.mubr.bf16.gmra.mxu0 %v173
  %v258 = vpop.f32.mrf.mxu0
  %v259 = vadd.f32 %v73, %v258
  %v260 = vpop.f32.mrf.mxu0
  %v261 = vadd.f32 %v77, %v260
  %v262 = vpop.f32.mrf.mxu0
  %v263 = vadd.f32 %v73, %v262
  %v264 = vpop.f32.mrf.mxu0
  %v265 = vadd.f32 %v77, %v264
  %266 = vdwg.mxu0
  %267 = vmatprep.subr.bf16.mxu0 0
  %268 = vmatpush1.bf16.msra.mxu0 0
  %269 = vmatprep.subr.bf16.mxu0 0
  %270 = vmatpush1.bf16.msra.mxu0 0
  %271 = vmatprep.subr.bf16.mxu0 0
  %272 = vmatpush1.bf16.msra.mxu0 0
  %273 = vmatprep.subr.bf16.mxu0 0
  %274 = vmatpush1.bf16.msra.mxu0 0
  %275 = vmatprep.subr.bf16.mxu0 0
  %276 = vmatpush1.bf16.msra.mxu0 0
  %277 = vmatprep.subr.bf16.mxu0 0
  %278 = vmatpush1.bf16.msra.mxu0 0
  %279 = vmatprep.subr.bf16.mxu0 %v189
  %280 = vmatpush1.bf16.msra.mxu0 %v186
  %281 = vmatprep.subr.bf16.mxu0 %v150
  %282 = vmatpush1.bf16.msra.mxu0 %v149
  %283 = vmatprep.subr.bf16.mxu0 0
  %284 = vmatpush2.bf16.msra.mxu0 0
  %285 = vmatprep.subr.bf16.mxu0 0
  %286 = vmatpush2.bf16.msra.mxu0 0
  %287 = vmatprep.subr.bf16.mxu0 0
  %288 = vmatpush2.bf16.msra.mxu0 0
  %289 = vmatprep.subr.bf16.mxu0 0
  %290 = vmatpush2.bf16.msra.mxu0 0
  %291 = vmatprep.subr.bf16.mxu0 0
  %292 = vmatpush2.bf16.msra.mxu0 0
  %293 = vmatprep.subr.bf16.mxu0 0
  %294 = vmatpush2.bf16.msra.mxu0 0
  %295 = vmatprep.subr.bf16.mxu0 0
  %296 = vmatpush2.bf16.msra.mxu0 0
  %297 = vmatprep.subr.bf16.mxu0 0
  %298 = vmatpush2.bf16.msra.mxu0 0
  %299 = vmatprep.mubr.bf16.mxu0 0
  %300 = vmatmul.mubr.bf16.gmra.mxu0 %v164
  %v301 = vpop.f32.mrf.mxu0
  %v302 = vadd.f32 %v81, %v301
  %v303 = vpop.f32.mrf.mxu0
  %v304 = vadd.f32 %v85, %v303
  %v305 = vpop.f32.mrf.mxu0
  %v306 = vadd.f32 %v81, %v305
  %v307 = vpop.f32.mrf.mxu0
  %v308 = vadd.f32 %v85, %v307
  %309 = vmatprep.mubr.bf16.mxu0 0
  %310 = vmatmul.mubr.bf16.gmra.mxu0 %v167
  %v311 = vpop.f32.mrf.mxu0
  %v312 = vadd.f32 %v81, %v311
  %v313 = vpop.f32.mrf.mxu0
  %v314 = vadd.f32 %v85, %v313
  %v315 = vpop.f32.mrf.mxu0
  %v316 = vadd.f32 %v81, %v315
  %v317 = vpop.f32.mrf.mxu0
  %v318 = vadd.f32 %v85, %v317
  %319 = vmatprep.mubr.bf16.mxu0 0
  %320 = vmatmul.mubr.bf16.gmra.mxu0 %v170
  %v321 = vpop.f32.mrf.mxu0
  %v322 = vadd.f32 %v81, %v321
  %v323 = vpop.f32.mrf.mxu0
  %v324 = vadd.f32 %v85, %v323
  %v325 = vpop.f32.mrf.mxu0
  %v326 = vadd.f32 %v81, %v325
  %v327 = vpop.f32.mrf.mxu0
  %v328 = vadd.f32 %v85, %v327
  %329 = vmatprep.mubr.bf16.mxu0 0
  %330 = vmatmul.mubr.bf16.gmra.mxu0 %v173
  %v331 = vpop.f32.mrf.mxu0
  %v332 = vadd.f32 %v81, %v331
  %v333 = vpop.f32.mrf.mxu0
  %v334 = vadd.f32 %v85, %v333
  %v335 = vpop.f32.mrf.mxu0
  %v336 = vadd.f32 %v81, %v335
  %v337 = vpop.f32.mrf.mxu0
  %v338 = vadd.f32 %v85, %v337
  %339 = vdwg.mxu0
  %340 = vmatprep.subr.bf16.mxu0 0
  %341 = vmatpush1.bf16.msra.mxu0 0
  %342 = vmatprep.subr.bf16.mxu0 0
  %343 = vmatpush1.bf16.msra.mxu0 0
  %344 = vmatprep.subr.bf16.mxu0 0
  %345 = vmatpush1.bf16.msra.mxu0 0
  %346 = vmatprep.subr.bf16.mxu0 0
  %347 = vmatpush1.bf16.msra.mxu0 0
  %348 = vmatprep.subr.bf16.mxu0 0
  %349 = vmatpush1.bf16.msra.mxu0 0
  %350 = vmatprep.subr.bf16.mxu0 0
  %351 = vmatpush1.bf16.msra.mxu0 0
  %352 = vmatprep.subr.bf16.mxu0 0
  %353 = vmatpush1.bf16.msra.mxu0 %v192
  %354 = vmatprep.subr.bf16.mxu0 0
  %355 = vmatpush1.bf16.msra.mxu0 %v151
  %356 = vmatprep.subr.bf16.mxu0 0
  %357 = vmatpush2.bf16.msra.mxu0 0
  %358 = vmatprep.subr.bf16.mxu0 0
  %359 = vmatpush2.bf16.msra.mxu0 0
  %360 = vmatprep.subr.bf16.mxu0 0
  %361 = vmatpush2.bf16.msra.mxu0 0
  %362 = vmatprep.subr.bf16.mxu0 0
  %363 = vmatpush2.bf16.msra.mxu0 0
  %364 = vmatprep.subr.bf16.mxu0 0
  %365 = vmatpush2.bf16.msra.mxu0 0
  %366 = vmatprep.subr.bf16.mxu0 0
  %367 = vmatpush2.bf16.msra.mxu0 0
  %368 = vmatprep.subr.bf16.mxu0 0
  %369 = vmatpush2.bf16.msra.mxu0 0
  %370 = vmatprep.subr.bf16.mxu0 0
  %371 = vmatpush2.bf16.msra.mxu0 0
  %372 = vmatprep.mubr.bf16.mxu0 0
  %373 = vmatmul.mubr.bf16.gmra.mxu0 %v164
  %v374 = vpop.f32.mrf.mxu0
  %v375 = vadd.f32 %v89, %v374
  %v376 = vpop.f32.mrf.mxu0
  %v377 = vpop.f32.mrf.mxu0
  %v378 = vadd.f32 %v89, %v377
  %v379 = vpop.f32.mrf.mxu0
  %380 = vmatprep.mubr.bf16.mxu0 0
  %381 = vmatmul.mubr.bf16.gmra.mxu0 %v167
  %v382 = vpop.f32.mrf.mxu0
  %v383 = vadd.f32 %v89, %v382
  %v384 = vpop.f32.mrf.mxu0
  %v385 = vpop.f32.mrf.mxu0
  %v386 = vadd.f32 %v89, %v385
  %v387 = vpop.f32.mrf.mxu0
  %388 = vmatprep.mubr.bf16.mxu0 0
  %389 = vmatmul.mubr.bf16.gmra.mxu0 %v170
  %v390 = vpop.f32.mrf.mxu0
  %v391 = vadd.f32 %v89, %v390
  %v392 = vpop.f32.mrf.mxu0
  %v393 = vpop.f32.mrf.mxu0
  %v394 = vadd.f32 %v89, %v393
  %v395 = vpop.f32.mrf.mxu0
  %396 = vmatprep.mubr.bf16.mxu0 0
  %397 = vmatmul.mubr.bf16.gmra.mxu0 %v173
  %v398 = vpop.f32.mrf.mxu0
  %v399 = vadd.f32 %v89, %v398
  %v400 = vpop.f32.mrf.mxu0
  %v401 = vpop.f32.mrf.mxu0
  %v402 = vadd.f32 %v89, %v401
  %v403 = vpop.f32.mrf.mxu0
  %404 = vdwg.mxu0
  %v405 = vmax.f32 %v229, 0.0
  %v406 = vmax.f32 %v231, 0.0
  %v407 = vmax.f32 %v302, 0.0
  %v408 = vmax.f32 %v304, 0.0
  %v409 = vmax.f32 %v375, 0.0
  %v410 = vmax.f32 %v233, 0.0
  %v411 = vmax.f32 %v235, 0.0
  %v412 = vmax.f32 %v306, 0.0
  %v413 = vmax.f32 %v308, 0.0
  %v414 = vmax.f32 %v378, 0.0
  %v415 = vmax.f32 %v239, 0.0
  %v416 = vmax.f32 %v241, 0.0
  %v417 = vmax.f32 %v312, 0.0
  %v418 = vmax.f32 %v314, 0.0
  %v419 = vmax.f32 %v383, 0.0
  %v420 = vmax.f32 %v243, 0.0
  %v421 = vmax.f32 %v245, 0.0
  %v422 = vmax.f32 %v316, 0.0
  %v423 = vmax.f32 %v318, 0.0
  %v424 = vmax.f32 %v386, 0.0
  %v425 = vmax.f32 %v249, 0.0
  %v426 = vmax.f32 %v251, 0.0
  %v427 = vmax.f32 %v322, 0.0
  %v428 = vmax.f32 %v324, 0.0
  %v429 = vmax.f32 %v391, 0.0
  %v430 = vmax.f32 %v253, 0.0
  %v431 = vmax.f32 %v255, 0.0
  %v432 = vmax.f32 %v326, 0.0
  %v433 = vmax.f32 %v328, 0.0
  %v434 = vmax.f32 %v394, 0.0
  %v435 = vmax.f32 %v259, 0.0
  %v436 = vmax.f32 %v261, 0.0
  %v437 = vmax.f32 %v332, 0.0
  %v438 = vmax.f32 %v334, 0.0
  %v439 = vmax.f32 %v399, 0.0
  %v440 = vmax.f32 %v263, 0.0
  %v441 = vmax.f32 %v265, 0.0
  %v442 = vmax.f32 %v336, 0.0
  %v443 = vmax.f32 %v338, 0.0
  %v444 = vmax.f32 %v402, 0.0
  %v445 = vld [vmem:[%s4] sm:$0x7]
  %v446 = vpack.c.bf16 %v410, %v405
  %v447 = vpack.c.bf16 %v411, %v406
  %v448 = vpack.c.bf16 %v412, %v407
  %v449 = vpack.c.bf16 %v413, %v408
  %v450 = vpack.c.bf16 %v414, %v409
  %v451 = vpack.c.bf16 %v420, %v415
  %v452 = vpack.c.bf16 %v421, %v416
  %v453 = vpack.c.bf16 %v422, %v417
  %v454 = vpack.c.bf16 %v423, %v418
  %v455 = vpack.c.bf16 %v424, %v419
  %v456 = vpack.c.bf16 %v430, %v425
  %v457 = vpack.c.bf16 %v431, %v426
  %v458 = vpack.c.bf16 %v432, %v427
  %v459 = vpack.c.bf16 %v433, %v428
  %v460 = vpack.c.bf16 %v434, %v429
  %v461 = vpack.c.bf16 %v440, %v435
  %v462 = vpack.c.bf16 %v441, %v436
  %v463 = vpack.c.bf16 %v442, %v437
  %v464 = vpack.c.bf16 %v443, %v438
  %v465 = vpack.c.bf16 %v444, %v439
  %v466 = vld [vmem:[%s3] sm:$0xf]
  %v467 = vld [vmem:[%s3 + $0x4] sm:$0xf]
  %v468 = vld [vmem:[%s3 + $0x8] sm:$0xf]
  %v469 = vld [vmem:[%s3 + $0xc] sm:$0xf]
  %v470 = vld [vmem:[%s3 + $0x10] sm:$0xf]
  %v471 = vld [vmem:[%s3 + $0x14] sm:$0xf]
  %v472 = vld [vmem:[%s3 + $0x18] sm:$0xf]
  %v473 = vld [vmem:[%s3 + $0x1c] sm:$0xf]
  %v474 = vld [vmem:[%s3 + $0x20] sm:$0xf]
  %v475 = vld [vmem:[%s3 + $0x24] sm:$0xf]
  %v476 = vld [vmem:[%s3 + $0x28] sm:$0xf]
  %v477 = vld [vmem:[%s3 + $0x2c] sm:$0xf]
  %v478 = vld [vmem:[%s3 + $0x30] sm:$0xf]
  %v479 = vld [vmem:[%s3 + $0x34] sm:$0xf]
  %v480 = vld [vmem:[%s3 + $0x38] sm:$0xf]
  %v481 = vld [vmem:[%s3 + $0x3c] sm:$0xf]
  %v482 = vld [vmem:[%s3 + $0x40] sm:$0xf]
  %v483 = vld [vmem:[%s3 + $0x44] sm:$0xf]
  %v484 = vld [vmem:[%s3 + $0x48] sm:$0xf]
  %v485 = vld [vmem:[%s3 + $0x4c] sm:$0xf]
  %v486 = vld [vmem:[%s3 + $0x50] sm:$0xf]
  %v487 = vld [vmem:[%s3 + $0x54] sm:$0xf]
  %v488 = vld [vmem:[%s3 + $0x58] sm:$0xf]
  %v489 = vld [vmem:[%s3 + $0x5c] sm:$0xf]
  %v490 = vld [vmem:[%s3 + $0x60] sm:$0xf]
  %v491 = vld [vmem:[%s3 + $0x64] sm:$0xf]
  %v492 = vld [vmem:[%s3 + $0x68] sm:$0xf]
  %v493 = vld [vmem:[%s3 + $0x6c] sm:$0xf]
  %v494 = vld [vmem:[%s3 + $0x70] sm:$0xf]
  %v495 = vld [vmem:[%s3 + $0x74] sm:$0xf]
  %v496 = vld [vmem:[%s3 + $0x78] sm:$0xf]
  %v497 = vld [vmem:[%s3 + $0x7c] sm:$0xf]
  %v498 = vld [vmem:[%s3 + $0x80] sm:$0xf]
  %v499 = vld [vmem:[%s3 + $0x84] sm:$0xf]
  %v500 = vld [vmem:[%s3 + $0x88] sm:$0xf]
  %v501 = vld [vmem:[%s3 + $0x8c] sm:$0xf]
  %v502 = vld [vmem:[%s3 + $0x90] sm:$0xf]
  %v503 = vld [vmem:[%s3 + $0x94] sm:$0xf]
  %v504 = vld [vmem:[%s3 + $0x98] sm:$0xf]
  %v505 = vld [vmem:[%s3 + $0x9c] sm:$0xf]
  %v506 = vld [vmem:[%s3 + $0xa0] sm:$0xf]
  %v507 = vld [vmem:[%s3 + $0xa4] sm:$0xf]
  %v508 = vld [vmem:[%s3 + $0xa8] sm:$0xf]
  %v509 = vld [vmem:[%s3 + $0xac] sm:$0xf]
  %v510 = vld [vmem:[%s3 + $0xb0] sm:$0xf]
  %v511 = vld [vmem:[%s3 + $0xb4] sm:$0xf]
  %v512 = vld [vmem:[%s3 + $0xb8] sm:$0xf]
  %v513 = vld [vmem:[%s3 + $0xbc] sm:$0xf]
  %v514 = vld [vmem:[%s3 + $0xc0] sm:$0xf]
  %v515 = vld [vmem:[%s3 + $0xc4] sm:$0xf]
  %v516 = vld [vmem:[%s3 + $0xc8] sm:$0xf]
  %v517 = vld [vmem:[%s3 + $0xcc] sm:$0xf]
  %v518 = vld [vmem:[%s3 + $0xd0] sm:$0xf]
  %v519 = vld [vmem:[%s3 + $0xd4] sm:$0xf]
  %v520 = vld [vmem:[%s3 + $0xd8] sm:$0xf]
  %v521 = vld [vmem:[%s3 + $0xdc] sm:$0xf]
  %v522 = vld [vmem:[%s3 + $0xe0] sm:$0xf]
  %v523 = vld [vmem:[%s3 + $0xe4] sm:$0xf]
  %v524 = vld [vmem:[%s3 + $0xe8] sm:$0xf]
  %v525 = vld [vmem:[%s3 + $0xec] sm:$0xf]
  %v526 = vld [vmem:[%s3 + $0xf0] sm:$0xf]
  %v527 = vld [vmem:[%s3 + $0xf4] sm:$0xf]
  %v528 = vld [vmem:[%s3 + $0xf8] sm:$0xf]
  %v529 = vld [vmem:[%s3 + $0xfc] sm:$0xf]
  %v530 = vld [vmem:[%s3 + $0x100] sm:$0xf]
  %v531 = vld [vmem:[%s3 + $0x104] sm:$0xf]
  %v532 = vld [vmem:[%s3 + $0x108] sm:$0xf]
  %v533 = vld [vmem:[%s3 + $0x10c] sm:$0xf]
  %v534 = vld [vmem:[%s3 + $0x110] sm:$0xf]
  %v535 = vld [vmem:[%s3 + $0x114] sm:$0xf]
  %v536 = vld [vmem:[%s3 + $0x118] sm:$0xf]
  %v537 = vld [vmem:[%s3 + $0x11c] sm:$0xf]
  %v538 = vlaneseq
  %v539 = vshrl.u32 %v538, 7
  %v540 = vsub.s32 0, %v539
  %v541 = vrot.slane %v445, %v540
  %v614 = vunpack.c.l.b16 %v466
  %v615 = vunpack.c.l.b16 %v467
  %v616 = vunpack.c.l.b16 %v468
  %v617 = vunpack.c.l.b16 %v469
  %v618 = vunpack.c.l.b16 %v470
  %v619 = vunpack.c.l.b16 %v471
  %v620 = vunpack.c.l.b16 %v472
  %v621 = vunpack.c.l.b16 %v473
  %v622 = vunpack.c.l.b16 %v474
  %v623 = vunpack.c.l.b16 %v475
  %v624 = vunpack.c.l.b16 %v476
  %v625 = vunpack.c.l.b16 %v477
  %v626 = vunpack.c.l.b16 %v478
  %v627 = vunpack.c.l.b16 %v479
  %v628 = vunpack.c.l.b16 %v480
  %v629 = vunpack.c.l.b16 %v481
  %v630 = vunpack.c.l.b16 %v482
  %v631 = vunpack.c.l.b16 %v483
  %v632 = vunpack.c.l.b16 %v484
  %v633 = vunpack.c.l.b16 %v485
  %v634 = vunpack.c.l.b16 %v486
  %v635 = vunpack.c.l.b16 %v487
  %v636 = vunpack.c.l.b16 %v488
  %v637 = vunpack.c.l.b16 %v489
  %v638 = vunpack.c.l.b16 %v490
  %v639 = vunpack.c.l.b16 %v491
  %v640 = vunpack.c.l.b16 %v492
  %v641 = vunpack.c.l.b16 %v493
  %v642 = vunpack.c.l.b16 %v494
  %v643 = vunpack.c.l.b16 %v495
  %v644 = vunpack.c.l.b16 %v496
  %v645 = vunpack.c.l.b16 %v497
  %v646 = vunpack.c.l.b16 %v498
  %v647 = vunpack.c.l.b16 %v499
  %v648 = vunpack.c.l.b16 %v500
  %v649 = vunpack.c.l.b16 %v501
  %v650 = vunpack.c.l.b16 %v502
  %v651 = vunpack.c.l.b16 %v503
  %v652 = vunpack.c.l.b16 %v504
  %v653 = vunpack.c.l.b16 %v505
  %v654 = vunpack.c.l.b16 %v506
  %v655 = vunpack.c.l.b16 %v507
  %v656 = vunpack.c.l.b16 %v508
  %v657 = vunpack.c.l.b16 %v509
  %v658 = vunpack.c.l.b16 %v510
  %v659 = vunpack.c.l.b16 %v511
  %v660 = vunpack.c.l.b16 %v512
  %v661 = vunpack.c.l.b16 %v513
  %v662 = vunpack.c.l.b16 %v514
  %v663 = vunpack.c.l.b16 %v515
  %v664 = vunpack.c.l.b16 %v516
  %v665 = vunpack.c.l.b16 %v517
  %v666 = vunpack.c.l.b16 %v518
  %v667 = vunpack.c.l.b16 %v519
  %v668 = vunpack.c.l.b16 %v520
  %v669 = vunpack.c.l.b16 %v521
  %v670 = vunpack.c.l.b16 %v522
  %v671 = vunpack.c.l.b16 %v523
  %v672 = vunpack.c.l.b16 %v524
  %v673 = vunpack.c.l.b16 %v525
  %v674 = vunpack.c.l.b16 %v526
  %v675 = vunpack.c.l.b16 %v527
  %v676 = vunpack.c.l.b16 %v528
  %v677 = vunpack.c.l.b16 %v529
  %v678 = vunpack.c.l.b16 %v530
  %v679 = vunpack.c.l.b16 %v531
  %v680 = vunpack.c.l.b16 %v532
  %v681 = vunpack.c.l.b16 %v533
  %v682 = vunpack.c.l.b16 %v534
  %v683 = vunpack.c.l.b16 %v535
  %v684 = vunpack.c.l.b16 %v536
  %v685 = vunpack.c.l.b16 %v537
  %v686 = vpack.c.b16 %v615, %v614
  %v687 = vpack.c.b16 %v617, %v616
  %v688 = vpack.c.b16 %v619, %v618
  %v689 = vpack.c.b16 %v621, %v620
  %v690 = vpack.c.b16 %v623, %v622
  %v691 = vpack.c.b16 %v625, %v624
  %v692 = vpack.c.b16 %v627, %v626
  %v693 = vpack.c.b16 %v629, %v628
  %v694 = vpack.c.b16 %v631, %v630
  %v695 = vpack.c.b16 %v633, %v632
  %v696 = vpack.c.b16 %v635, %v634
  %v697 = vpack.c.b16 %v637, %v636
  %v698 = vpack.c.b16 %v639, %v638
  %v699 = vpack.c.b16 %v641, %v640
  %v700 = vpack.c.b16 %v643, %v642
  %v701 = vpack.c.b16 %v645, %v644
  %v702 = vpack.c.b16 %v647, %v646
  %v703 = vpack.c.b16 %v649, %v648
  %v704 = vpack.c.b16 %v651, %v650
  %v705 = vpack.c.b16 %v653, %v652
  %v706 = vpack.c.b16 %v655, %v654
  %v707 = vpack.c.b16 %v657, %v656
  %v708 = vpack.c.b16 %v659, %v658
  %v709 = vpack.c.b16 %v661, %v660
  %v710 = vpack.c.b16 %v663, %v662
  %v711 = vpack.c.b16 %v665, %v664
  %v712 = vpack.c.b16 %v667, %v666
  %v713 = vpack.c.b16 %v669, %v668
  %v714 = vpack.c.b16 %v671, %v670
  %v715 = vpack.c.b16 %v673, %v672
  %v716 = vpack.c.b16 %v675, %v674
  %v717 = vpack.c.b16 %v677, %v676
  %v718 = vpack.c.b16 %v679, %v678
  %v719 = vpack.c.b16 %v681, %v680
  %v720 = vpack.c.b16 %v683, %v682
  %v721 = vpack.c.b16 %v685, %v684
  %vm758 = vcmask 523264
  %v760 = vsel %vm758, %v450, 0
  %v763 = vsel %vm758, %v455, 0
  %v766 = vsel %vm758, %v460, 0
  %v769 = vsel %vm758, %v465, 0
  %771 = vmatprep.subr.bf16.mxu0 0
  %772 = vmatpush1.bf16.msra.mxu0 %v693
  %773 = vmatprep.subr.bf16.mxu0 0
  %774 = vmatpush1.bf16.msra.mxu0 %v692
  %775 = vmatprep.subr.bf16.mxu0 0
  %776 = vmatpush1.bf16.msra.mxu0 %v691
  %777 = vmatprep.subr.bf16.mxu0 0
  %778 = vmatpush1.bf16.msra.mxu0 %v690
  %779 = vmatprep.subr.bf16.mxu0 0
  %780 = vmatpush1.bf16.msra.mxu0 %v689
  %781 = vmatprep.subr.bf16.mxu0 0
  %782 = vmatpush1.bf16.msra.mxu0 %v688
  %783 = vmatprep.subr.bf16.mxu0 0
  %784 = vmatpush1.bf16.msra.mxu0 %v687
  %785 = vmatprep.subr.bf16.mxu0 0
  %786 = vmatpush1.bf16.msra.mxu0 %v686
  %787 = vmatprep.subr.bf16.mxu0 0
  %788 = vmatpush2.bf16.msra.mxu0 %v701
  %789 = vmatprep.subr.bf16.mxu0 0
  %790 = vmatpush2.bf16.msra.mxu0 %v700
  %791 = vmatprep.subr.bf16.mxu0 0
  %792 = vmatpush2.bf16.msra.mxu0 %v699
  %793 = vmatprep.subr.bf16.mxu0 0
  %794 = vmatpush2.bf16.msra.mxu0 %v698
  %795 = vmatprep.subr.bf16.mxu0 0
  %796 = vmatpush2.bf16.msra.mxu0 %v697
  %797 = vmatprep.subr.bf16.mxu0 0
  %798 = vmatpush2.bf16.msra.mxu0 %v696
  %799 = vmatprep.subr.bf16.mxu0 0
  %800 = vmatpush2.bf16.msra.mxu0 %v695
  %801 = vmatprep.subr.bf16.mxu0 0
  %802 = vmatpush2.bf16.msra.mxu0 %v694
  %803 = vmatprep.mubr.bf16.mxu0 %v447
  %804 = vmatmul.mubr.bf16.gmra.mxu0 %v446
  %v805 = vpop.f32.mrf.mxu0
  %v806 = vadd.f32 %v541, %v805
  %v807 = vpop.f32.mrf.mxu0
  %v808 = vpop.f32.mrf.mxu0
  %v809 = vadd.f32 %v541, %v808
  %v810 = vpop.f32.mrf.mxu0
  %811 = vmatprep.mubr.bf16.mxu0 %v452
  %812 = vmatmul.mubr.bf16.gmra.mxu0 %v451
  %v813 = vpop.f32.mrf.mxu0
  %v814 = vadd.f32 %v541, %v813
  %v815 = vpop.f32.mrf.mxu0
  %v816 = vpop.f32.mrf.mxu0
  %v817 = vadd.f32 %v541, %v816
  %v818 = vpop.f32.mrf.mxu0
  %819 = vmatprep.mubr.bf16.mxu0 %v457
  %820 = vmatmul.mubr.bf16.gmra.mxu0 %v456
  %v821 = vpop.f32.mrf.mxu0
  %v822 = vadd.f32 %v541, %v821
  %v823 = vpop.f32.mrf.mxu0
  %v824 = vpop.f32.mrf.mxu0
  %v825 = vadd.f32 %v541, %v824
  %v826 = vpop.f32.mrf.mxu0
  %827 = vmatprep.mubr.bf16.mxu0 %v462
  %828 = vmatmul.mubr.bf16.gmra.mxu0 %v461
  %v829 = vpop.f32.mrf.mxu0
  %v830 = vadd.f32 %v541, %v829
  %v831 = vpop.f32.mrf.mxu0
  %v832 = vpop.f32.mrf.mxu0
  %v833 = vadd.f32 %v541, %v832
  %v834 = vpop.f32.mrf.mxu0
  %835 = vdwg.mxu0
  %836 = vmatprep.subr.bf16.mxu0 0
  %837 = vmatpush1.bf16.msra.mxu0 %v709
  %838 = vmatprep.subr.bf16.mxu0 0
  %839 = vmatpush1.bf16.msra.mxu0 %v708
  %840 = vmatprep.subr.bf16.mxu0 0
  %841 = vmatpush1.bf16.msra.mxu0 %v707
  %842 = vmatprep.subr.bf16.mxu0 0
  %843 = vmatpush1.bf16.msra.mxu0 %v706
  %844 = vmatprep.subr.bf16.mxu0 0
  %845 = vmatpush1.bf16.msra.mxu0 %v705
  %846 = vmatprep.subr.bf16.mxu0 0
  %847 = vmatpush1.bf16.msra.mxu0 %v704
  %848 = vmatprep.subr.bf16.mxu0 0
  %849 = vmatpush1.bf16.msra.mxu0 %v703
  %850 = vmatprep.subr.bf16.mxu0 0
  %851 = vmatpush1.bf16.msra.mxu0 %v702
  %852 = vmatprep.subr.bf16.mxu0 0
  %853 = vmatpush2.bf16.msra.mxu0 %v717
  %854 = vmatprep.subr.bf16.mxu0 0
  %855 = vmatpush2.bf16.msra.mxu0 %v716
  %856 = vmatprep.subr.bf16.mxu0 0
  %857 = vmatpush2.bf16.msra.mxu0 %v715
  %858 = vmatprep.subr.bf16.mxu0 0
  %859 = vmatpush2.bf16.msra.mxu0 %v714
  %860 = vmatprep.subr.bf16.mxu0 0
  %861 = vmatpush2.bf16.msra.mxu0 %v713
  %862 = vmatprep.subr.bf16.mxu0 0
  %863 = vmatpush2.bf16.msra.mxu0 %v712
  %864 = vmatprep.subr.bf16.mxu0 0
  %865 = vmatpush2.bf16.msra.mxu0 %v711
  %866 = vmatprep.subr.bf16.mxu0 0
  %867 = vmatpush2.bf16.msra.mxu0 %v710
  %868 = vmatprep.mubr.bf16.mxu0 %v449
  %869 = vmatmul.mubr.bf16.gmra.mxu0 %v448
  %v870 = vpop.f32.mrf.mxu0
  %v871 = vadd.f32 %v806, %v870
  %v872 = vpop.f32.mrf.mxu0
  %v873 = vpop.f32.mrf.mxu0
  %v874 = vadd.f32 %v809, %v873
  %v875 = vpop.f32.mrf.mxu0
  %876 = vmatprep.mubr.bf16.mxu0 %v454
  %877 = vmatmul.mubr.bf16.gmra.mxu0 %v453
  %v878 = vpop.f32.mrf.mxu0
  %v879 = vadd.f32 %v814, %v878
  %v880 = vpop.f32.mrf.mxu0
  %v881 = vpop.f32.mrf.mxu0
  %v882 = vadd.f32 %v817, %v881
  %v883 = vpop.f32.mrf.mxu0
  %884 = vmatprep.mubr.bf16.mxu0 %v459
  %885 = vmatmul.mubr.bf16.gmra.mxu0 %v458
  %v886 = vpop.f32.mrf.mxu0
  %v887 = vadd.f32 %v822, %v886
  %v888 = vpop.f32.mrf.mxu0
  %v889 = vpop.f32.mrf.mxu0
  %v890 = vadd.f32 %v825, %v889
  %v891 = vpop.f32.mrf.mxu0
  %892 = vmatprep.mubr.bf16.mxu0 %v464
  %893 = vmatmul.mubr.bf16.gmra.mxu0 %v463
  %v894 = vpop.f32.mrf.mxu0
  %v895 = vadd.f32 %v830, %v894
  %v896 = vpop.f32.mrf.mxu0
  %v897 = vpop.f32.mrf.mxu0
  %v898 = vadd.f32 %v833, %v897
  %v899 = vpop.f32.mrf.mxu0
  %900 = vdwg.mxu0
  %901 = vmatprep.subr.bf16.mxu0 0
  %902 = vmatpush1.bf16.msra.mxu0 0
  %903 = vmatprep.subr.bf16.mxu0 0
  %904 = vmatpush1.bf16.msra.mxu0 0
  %905 = vmatprep.subr.bf16.mxu0 0
  %906 = vmatpush1.bf16.msra.mxu0 0
  %907 = vmatprep.subr.bf16.mxu0 0
  %908 = vmatpush1.bf16.msra.mxu0 0
  %909 = vmatprep.subr.bf16.mxu0 0
  %910 = vmatpush1.bf16.msra.mxu0 %v721
  %911 = vmatprep.subr.bf16.mxu0 0
  %912 = vmatpush1.bf16.msra.mxu0 %v720
  %913 = vmatprep.subr.bf16.mxu0 0
  %914 = vmatpush1.bf16.msra.mxu0 %v719
  %915 = vmatprep.subr.bf16.mxu0 0
  %916 = vmatpush1.bf16.msra.mxu0 %v718
  %917 = vmatprep.subr.bf16.mxu0 0
  %918 = vmatpush2.bf16.msra.mxu0 0
  %919 = vmatprep.subr.bf16.mxu0 0
  %920 = vmatpush2.bf16.msra.mxu0 0
  %921 = vmatprep.subr.bf16.mxu0 0
  %922 = vmatpush2.bf16.msra.mxu0 0
  %923 = vmatprep.subr.bf16.mxu0 0
  %924 = vmatpush2.bf16.msra.mxu0 0
  %925 = vmatprep.subr.bf16.mxu0 0
  %926 = vmatpush2.bf16.msra.mxu0 0
  %927 = vmatprep.subr.bf16.mxu0 0
  %928 = vmatpush2.bf16.msra.mxu0 0
  %929 = vmatprep.subr.bf16.mxu0 0
  %930 = vmatpush2.bf16.msra.mxu0 0
  %931 = vmatprep.subr.bf16.mxu0 0
  %932 = vmatpush2.bf16.msra.mxu0 0
  %933 = vmatprep.mubr.bf16.mxu0 0
  %934 = vmatmul.mubr.bf16.gmra.mxu0 %v760
  %v935 = vpop.f32.mrf.mxu0
  %v936 = vadd.f32 %v871, %v935
  %v937 = vpop.f32.mrf.mxu0
  %v938 = vpop.f32.mrf.mxu0
  %v939 = vadd.f32 %v874, %v938
  %v940 = vpop.f32.mrf.mxu0
  %941 = vmatprep.mubr.bf16.mxu0 0
  %942 = vmatmul.mubr.bf16.gmra.mxu0 %v763
  %v943 = vpop.f32.mrf.mxu0
  %v944 = vadd.f32 %v879, %v943
  %v945 = vpop.f32.mrf.mxu0
  %v946 = vpop.f32.mrf.mxu0
  %v947 = vadd.f32 %v882, %v946
  %v948 = vpop.f32.mrf.mxu0
  %949 = vmatprep.mubr.bf16.mxu0 0
  %950 = vmatmul.mubr.bf16.gmra.mxu0 %v766
  %v951 = vpop.f32.mrf.mxu0
  %v952 = vadd.f32 %v887, %v951
  %v953 = vpop.f32.mrf.mxu0
  %v954 = vpop.f32.mrf.mxu0
  %v955 = vadd.f32 %v890, %v954
  %v956 = vpop.f32.mrf.mxu0
  %957 = vmatprep.mubr.bf16.mxu0 0
  %958 = vmatmul.mubr.bf16.gmra.mxu0 %v769
  %v959 = vpop.f32.mrf.mxu0
  %v960 = vadd.f32 %v895, %v959
  %v961 = vpop.f32.mrf.mxu0
  %v962 = vpop.f32.mrf.mxu0
  %v963 = vadd.f32 %v898, %v962
  %v964 = vpop.f32.mrf.mxu0
  %965 = vdwg.mxu0
  %v966 = vmax.f32 %v936, 0.0
  %v967 = vmax.f32 %v939, 0.0
  %v968 = vmax.f32 %v944, 0.0
  %v969 = vmax.f32 %v947, 0.0
  %v970 = vmax.f32 %v952, 0.0
  %v971 = vmax.f32 %v955, 0.0
  %v972 = vmax.f32 %v960, 0.0
  %v973 = vmax.f32 %v963, 0.0
  %v974 = vlaneseq
  %v975 = vshrl.u32 %v974, 7
  %v976 = vsub.s32 1, %v975
  %v977 = vrot.slane %v445, %v976
  %v978 = vmul.f32 %v966, %v977
  %v979 = vmul.f32 %v967, %v977
  %v980 = vmul.f32 %v968, %v977
  %v981 = vmul.f32 %v969, %v977
  %v982 = vmul.f32 %v970, %v977
  %v983 = vmul.f32 %v971, %v977
  %v984 = vmul.f32 %v972, %v977
  %v985 = vmul.f32 %v973, %v977
  %v986 = vlaneseq
  %v987 = vshrl.u32 %v986, 7
  %v988 = vsub.s32 2, %v987
  %v989 = vrot.slane %v445, %v988
  %v990 = vadd.f32 %v978, %v989
  %v991 = vadd.f32 %v979, %v989
  %v992 = vadd.f32 %v980, %v989
  %v993 = vadd.f32 %v981, %v989
  %v994 = vadd.f32 %v982, %v989
  %v995 = vadd.f32 %v983, %v989
  %v996 = vadd.f32 %v984, %v989
  %v997 = vadd.f32 %v985, %v989
  %v998 = vmax.f32 %v990, %v992
  %v999 = vmax.f32 %v991, %v993
  %v1000 = vmax.f32 %v994, %v996
  %v1001 = vmax.f32 %v995, %v997
  %v1002 = vmax.f32 %v998, %v1000
  %v1003 = vmax.f32 %v999, %v1001
  %v1004 = vpack.c.bf16 %v1003, %v1002
  %v1005 = vld [vmem:[%s5] sm:$0xf]
  %v1006 = vld [vmem:[%s5 + $0x4] sm:$0xf]
  %v1007 = vld [vmem:[%s5 + $0x8] sm:$0xf]
  %v1008 = vld [vmem:[%s5 + $0xc] sm:$0xf]
  %v1009 = vld [vmem:[%s5 + $0x10] sm:$0xf]
  %v1010 = vld [vmem:[%s5 + $0x14] sm:$0xf]
  %v1011 = vld [vmem:[%s5 + $0x18] sm:$0xf]
  %v1012 = vld [vmem:[%s5 + $0x1c] sm:$0xf]
  %v1013 = vld [vmem:[%s6] sm:$0x1]
  %v1015 = vlaneseq
  %v1016 = vshrl.u32 %v1015, 7
  %v1017 = vsub.s32 0, %v1016
  %v1018 = vrot.slane %v1013, %v1017
  %v1028 = vunpack.c.l.b16 %v1005
  %v1029 = vunpack.c.l.b16 %v1006
  %v1030 = vunpack.c.l.b16 %v1007
  %v1031 = vunpack.c.l.b16 %v1008
  %v1032 = vunpack.c.l.b16 %v1009
  %v1033 = vunpack.c.l.b16 %v1010
  %v1034 = vunpack.c.l.b16 %v1011
  %v1035 = vunpack.c.l.b16 %v1012
  %v1036 = vpack.c.b16 %v1029, %v1028
  %v1037 = vpack.c.b16 %v1031, %v1030
  %v1038 = vpack.c.b16 %v1033, %v1032
  %v1039 = vpack.c.b16 %v1035, %v1034
  %v1045 = vsel %vm758, %v1004, 0
  %1047 = vmatprep.subr.bf16.mxu0 0
  %1048 = vmatpush1.bf16.msra.mxu0 0
  %1049 = vmatprep.subr.bf16.mxu0 0
  %1050 = vmatpush1.bf16.msra.mxu0 0
  %1051 = vmatprep.subr.bf16.mxu0 0
  %1052 = vmatpush1.bf16.msra.mxu0 0
  %1053 = vmatprep.subr.bf16.mxu0 0
  %1054 = vmatpush1.bf16.msra.mxu0 0
  %1055 = vmatprep.subr.bf16.mxu0 0
  %1056 = vmatpush1.bf16.msra.mxu0 %v1039
  %1057 = vmatprep.subr.bf16.mxu0 0
  %1058 = vmatpush1.bf16.msra.mxu0 %v1038
  %1059 = vmatprep.subr.bf16.mxu0 0
  %1060 = vmatpush1.bf16.msra.mxu0 %v1037
  %1061 = vmatprep.subr.bf16.mxu0 0
  %1062 = vmatpush1.bf16.msra.mxu0 %v1036
  %1063 = vmatprep.subr.bf16.mxu0 0
  %1064 = vmatpush2.bf16.msra.mxu0 0
  %1065 = vmatprep.subr.bf16.mxu0 0
  %1066 = vmatpush2.bf16.msra.mxu0 0
  %1067 = vmatprep.subr.bf16.mxu0 0
  %1068 = vmatpush2.bf16.msra.mxu0 0
  %1069 = vmatprep.subr.bf16.mxu0 0
  %1070 = vmatpush2.bf16.msra.mxu0 0
  %1071 = vmatprep.subr.bf16.mxu0 0
  %1072 = vmatpush2.bf16.msra.mxu0 0
  %1073 = vmatprep.subr.bf16.mxu0 0
  %1074 = vmatpush2.bf16.msra.mxu0 0
  %1075 = vmatprep.subr.bf16.mxu0 0
  %1076 = vmatpush2.bf16.msra.mxu0 0
  %1077 = vmatprep.subr.bf16.mxu0 0
  %1078 = vmatpush2.bf16.msra.mxu0 0
  %1079 = vmatprep.mubr.bf16.mxu0 0
  %1080 = vmatmul.mubr.bf16.gmra.mxu0 %v1045
  %v1081 = vpop.f32.mrf.mxu0
  %v1082 = vadd.f32 %v1018, %v1081
  %v1083 = vpop.f32.mrf.mxu0
  %v1084 = vpop.f32.mrf.mxu0
  %v1085 = vadd.f32 %v1018, %v1084
  %v1086 = vpop.f32.mrf.mxu0
  %1087 = vdwg.mxu0
  %v1088 = vmax.f32 %v1082, 0.0
  %v1089 = vmax.f32 %v1085, 0.0
  %v1090 = vld [vmem:[%s8] sm:$0x7]
  %v1091 = vpack.c.bf16 %v1089, %v1088
  %v1092 = vld [vmem:[%s7] sm:$0xf]
  %v1093 = vld [vmem:[%s7 + $0x4] sm:$0xf]
  %v1094 = vld [vmem:[%s7 + $0x8] sm:$0xf]
  %v1095 = vld [vmem:[%s7 + $0xc] sm:$0xf]
  %v1096 = vlaneseq
  %v1097 = vshrl.u32 %v1096, 7
  %v1098 = vsub.s32 0, %v1097
  %v1099 = vrot.slane %v1090, %v1098
  %v1104 = vunpack.c.l.b16 %v1092
  %v1105 = vunpack.c.l.b16 %v1093
  %v1106 = vunpack.c.l.b16 %v1094
  %v1107 = vunpack.c.l.b16 %v1095
  %v1108 = vpack.c.b16 %v1105, %v1104
  %v1109 = vpack.c.b16 %v1107, %v1106
  %vm1112 = vcmask 261120
  %v1114 = vsel %vm1112, %v1091, 0
  %1116 = vmatprep.subr.bf16.mxu0 0
  %1117 = vmatpush1.bf16.msra.mxu0 0
  %1118 = vmatprep.subr.bf16.mxu0 0
  %1119 = vmatpush1.bf16.msra.mxu0 0
  %1120 = vmatprep.subr.bf16.mxu0 0
  %1121 = vmatpush1.bf16.msra.mxu0 0
  %1122 = vmatprep.subr.bf16.mxu0 0
  %1123 = vmatpush1.bf16.msra.mxu0 0
  %1124 = vmatprep.subr.bf16.mxu0 0
  %1125 = vmatpush1.bf16.msra.mxu0 0
  %1126 = vmatprep.subr.bf16.mxu0 0
  %1127 = vmatpush1.bf16.msra.mxu0 0
  %1128 = vmatprep.subr.bf16.mxu0 0
  %1129 = vmatpush1.bf16.msra.mxu0 %v1109
  %1130 = vmatprep.subr.bf16.mxu0 0
  %1131 = vmatpush1.bf16.msra.mxu0 %v1108
  %1132 = vmatprep.subr.bf16.mxu0 0
  %1133 = vmatpush2.bf16.msra.mxu0 0
  %1134 = vmatprep.subr.bf16.mxu0 0
  %1135 = vmatpush2.bf16.msra.mxu0 0
  %1136 = vmatprep.subr.bf16.mxu0 0
  %1137 = vmatpush2.bf16.msra.mxu0 0
  %1138 = vmatprep.subr.bf16.mxu0 0
  %1139 = vmatpush2.bf16.msra.mxu0 0
  %1140 = vmatprep.subr.bf16.mxu0 0
  %1141 = vmatpush2.bf16.msra.mxu0 0
  %1142 = vmatprep.subr.bf16.mxu0 0
  %1143 = vmatpush2.bf16.msra.mxu0 0
  %1144 = vmatprep.subr.bf16.mxu0 0
  %1145 = vmatpush2.bf16.msra.mxu0 0
  %1146 = vmatprep.subr.bf16.mxu0 0
  %1147 = vmatpush2.bf16.msra.mxu0 0
  %1148 = vmatprep.mubr.bf16.mxu0 0
  %1149 = vmatmul.mubr.bf16.gmra.mxu0 %v1114
  %v1150 = vpop.f32.mrf.mxu0
  %v1151 = vadd.f32 %v1099, %v1150
  %v1152 = vpop.f32.mrf.mxu0
  %v1153 = vpop.f32.mrf.mxu0
  %v1154 = vadd.f32 %v1099, %v1153
  %v1155 = vpop.f32.mrf.mxu0
  %1156 = vdwg.mxu0
  %v1157 = vmax.f32 %v1151, 0.0
  %v1158 = vmax.f32 %v1154, 0.0
  %v1159 = vlaneseq
  %v1160 = vshrl.u32 %v1159, 7
  %v1161 = vsub.s32 1, %v1160
  %v1162 = vrot.slane %v1090, %v1161
  %v1163 = vmul.f32 %v1157, %v1162
  %v1164 = vmul.f32 %v1158, %v1162
  %v1165 = vlaneseq
  %v1166 = vshrl.u32 %v1165, 7
  %v1167 = vsub.s32 2, %v1166
  %v1168 = vrot.slane %v1090, %v1167
  %v1169 = vadd.f32 %v1163, %v1168
  %v1170 = vadd.f32 %v1164, %v1168
  %v1171 = vmax.f32 %v1169, 0.0
  %v1172 = vmax.f32 %v1170, 0.0
  %v1174 = vrot.slane %v1171, 4
  %v1176 = vadd.f32 %v1171, %v1174
  %v1177 = vmul.f32 %v1176, 0.5
  %v1178 = vld [vmem:[%s9] sm:$0xff]
  %v1179 = vld [vmem:[%s9 + $0x8] sm:$0xff]
  %v1180 = vld [vmem:[%s9 + $0x10] sm:$0xff]
  %v1181 = vld [vmem:[%s9 + $0x18] sm:$0xff]
  %v1183 = vsel %vm1112, %v1177, 0
  %1185 = vmatprep.subr.mxu0 0.0
  %1186 = vmatpush1.msra.mxu0 0.0
  %1187 = vmatprep.subr.mxu0 0.0
  %1188 = vmatpush1.msra.mxu0 0.0
  %1189 = vmatprep.subr.mxu0 0.0
  %1190 = vmatpush1.msra.mxu0 0.0
  %1191 = vmatprep.subr.mxu0 0.0
  %1192 = vmatpush1.msra.mxu0 0.0
  %1193 = vmatprep.subr.mxu0 0.0
  %1194 = vmatpush1.msra.mxu0 0.0
  %1195 = vmatprep.subr.mxu0 0.0
  %1196 = vmatpush1.msra.mxu0 0.0
  %1197 = vmatprep.subr.mxu0 0.0
  %1198 = vmatpush1.msra.mxu0 0.0
  %1199 = vmatprep.subr.mxu0 0.0
  %1200 = vmatpush1.msra.mxu0 0.0
  %1201 = vmatprep.subr.mxu0 0.0
  %1202 = vmatpush1.msra.mxu0 0.0
  %1203 = vmatprep.subr.mxu0 0.0
  %1204 = vmatpush1.msra.mxu0 0.0
  %1205 = vmatprep.subr.mxu0 0.0
  %1206 = vmatpush1.msra.mxu0 0.0
  %1207 = vmatprep.subr.mxu0 0.0
  %1208 = vmatpush1.msra.mxu0 0.0
  %1209 = vmatprep.subr.mxu0 0.0
  %1210 = vmatpush1.msra.mxu0 %v1181
  %1211 = vmatprep.subr.mxu0 0.0
  %1212 = vmatpush1.msra.mxu0 %v1180
  %1213 = vmatprep.subr.mxu0 0.0
  %1214 = vmatpush1.msra.mxu0 %v1179
  %1215 = vmatprep.subr.mxu0 0.0
  %1216 = vmatpush1.msra.mxu0 %v1178
  %1217 = vmatprep.subr.mxu0 0.0
  %1218 = vmatpush2.msra.mxu0 0.0
  %1219 = vmatprep.subr.mxu0 0.0
  %1220 = vmatpush2.msra.mxu0 0.0
  %1221 = vmatprep.subr.mxu0 0.0
  %1222 = vmatpush2.msra.mxu0 0.0
  %1223 = vmatprep.subr.mxu0 0.0
  %1224 = vmatpush2.msra.mxu0 0.0
  %1225 = vmatprep.subr.mxu0 0.0
  %1226 = vmatpush2.msra.mxu0 0.0
  %1227 = vmatprep.subr.mxu0 0.0
  %1228 = vmatpush2.msra.mxu0 0.0
  %1229 = vmatprep.subr.mxu0 0.0
  %1230 = vmatpush2.msra.mxu0 0.0
  %1231 = vmatprep.subr.mxu0 0.0
  %1232 = vmatpush2.msra.mxu0 0.0
  %1233 = vmatprep.subr.mxu0 0.0
  %1234 = vmatpush2.msra.mxu0 0.0
  %1235 = vmatprep.subr.mxu0 0.0
  %1236 = vmatpush2.msra.mxu0 0.0
  %1237 = vmatprep.subr.mxu0 0.0
  %1238 = vmatpush2.msra.mxu0 0.0
  %1239 = vmatprep.subr.mxu0 0.0
  %1240 = vmatpush2.msra.mxu0 0.0
  %1241 = vmatprep.subr.mxu0 0.0
  %1242 = vmatpush2.msra.mxu0 0.0
  %1243 = vmatprep.subr.mxu0 0.0
  %1244 = vmatpush2.msra.mxu0 0.0
  %1245 = vmatprep.subr.mxu0 0.0
  %1246 = vmatpush2.msra.mxu0 0.0
  %1247 = vmatprep.subr.mxu0 0.0
  %1248 = vmatpush2.msra.mxu0 0.0
  %1249 = vmatprep.mubr.f32.mxu0 0.0
  %1250 = vmatmul.mubr.f32.gmra.mxu0 %v1183
  %v1251 = vpop.f32.mrf.mxu0
  %v1252 = vadd.f32 0.0, %v1251
  %v1253 = vpop.f32.mrf.mxu0
  %1254 = vdwg.mxu0
  %1256 = vrot.lane.b32.xlu0 %v1252, 96
  %v1257 = vpop.permute.xlu0 %1256
  %v1258 = vsel %vm1112, %v1252, 0
  %v1260 = vsel %vm1112, %v1257, 0
  %1262 = vmatprep.subr.mxu0 0.0
  %1263 = vmatpush1.xpose.msra.mxu0 0.0
  %1264 = vmatprep.subr.mxu0 0.0
  %1265 = vmatpush1.xpose.msra.mxu0 0.0
  %1266 = vmatprep.subr.mxu0 0.0
  %1267 = vmatpush1.xpose.msra.mxu0 0.0
  %1268 = vmatprep.subr.mxu0 0.0
  %1269 = vmatpush1.xpose.msra.mxu0 0.0
  %1270 = vmatprep.subr.mxu0 0.0
  %1271 = vmatpush1.xpose.msra.mxu0 0.0
  %1272 = vmatprep.subr.mxu0 0.0
  %1273 = vmatpush1.xpose.msra.mxu0 0.0
  %1274 = vmatprep.subr.mxu0 0.0
  %1275 = vmatpush1.xpose.msra.mxu0 0.0
  %1276 = vmatprep.subr.mxu0 0.0
  %1277 = vmatpush1.xpose.msra.mxu0 0.0
  %1278 = vmatprep.subr.mxu0 0.0
  %1279 = vmatpush1.xpose.msra.mxu0 0.0
  %1280 = vmatprep.subr.mxu0 0.0
  %1281 = vmatpush1.xpose.msra.mxu0 0.0
  %1282 = vmatprep.subr.mxu0 0.0
  %1283 = vmatpush1.xpose.msra.mxu0 0.0
  %1284 = vmatprep.subr.mxu0 0.0
  %1285 = vmatpush1.xpose.msra.mxu0 0.0
  %1286 = vmatprep.subr.mxu0 0.0
  %1287 = vmatpush1.xpose.msra.mxu0 0.0
  %1288 = vmatprep.subr.mxu0 0.0
  %1289 = vmatpush1.xpose.msra.mxu0 0.0
  %1290 = vmatprep.subr.mxu0 0.0
  %1291 = vmatpush1.xpose.msra.mxu0 0.0
  %1292 = vmatprep.subr.mxu0 0.0
  %1293 = vmatpush1.xpose.msra.mxu0 %v1260
  %1294 = vmatprep.subr.mxu0 0.0
  %1295 = vmatpush2.xpose.msra.mxu0 0.0
  %1296 = vmatprep.subr.mxu0 0.0
  %1297 = vmatpush2.xpose.msra.mxu0 0.0
  %1298 = vmatprep.subr.mxu0 0.0
  %1299 = vmatpush2.xpose.msra.mxu0 0.0
  %1300 = vmatprep.subr.mxu0 0.0
  %1301 = vmatpush2.xpose.msra.mxu0 0.0
  %1302 = vmatprep.subr.mxu0 0.0
  %1303 = vmatpush2.xpose.msra.mxu0 0.0
  %1304 = vmatprep.subr.mxu0 0.0
  %1305 = vmatpush2.xpose.msra.mxu0 0.0
  %1306 = vmatprep.subr.mxu0 0.0
  %1307 = vmatpush2.xpose.msra.mxu0 0.0
  %1308 = vmatprep.subr.mxu0 0.0
  %1309 = vmatpush2.xpose.msra.mxu0 0.0
  %1310 = vmatprep.subr.mxu0 0.0
  %1311 = vmatpush2.xpose.msra.mxu0 0.0
  %1312 = vmatprep.subr.mxu0 0.0
  %1313 = vmatpush2.xpose.msra.mxu0 0.0
  %1314 = vmatprep.subr.mxu0 0.0
  %1315 = vmatpush2.xpose.msra.mxu0 0.0
  %1316 = vmatprep.subr.mxu0 0.0
  %1317 = vmatpush2.xpose.msra.mxu0 0.0
  %1318 = vmatprep.subr.mxu0 0.0
  %1319 = vmatpush2.xpose.msra.mxu0 0.0
  %1320 = vmatprep.subr.mxu0 0.0
  %1321 = vmatpush2.xpose.msra.mxu0 0.0
  %1322 = vmatprep.subr.mxu0 0.0
  %1323 = vmatpush2.xpose.msra.mxu0 0.0
  %1324 = vmatprep.subr.mxu0 0.0
  %1325 = vmatpush2.xpose.msra.mxu0 0.0
  %1326 = vmatprep.mubr.f32.mxu0 0.0
  %1327 = vmatmul.mubr.f32.gmra.mxu0 %v1258
  %v1328 = vpop.f32.mrf.mxu0
  %v1329 = vadd.f32 0.0, %v1328
  %v1330 = vpop.f32.mrf.mxu0
  %1331 = vdwg.mxu0
  %v1332 = vmul.f32 %v1329, 0.17677669
  %vm1333 = vcmask 27648
  %v1334 = vsel %vm1333, %v1332, -inf
  %1335 = vmax.xlane.f32.xlu0 %v1334
  %v1336 = vpop.xlane.xlu0 %1335
  %v1337 = vsub.f32 %v1332, %v1336
  %v1338 = vmul.f32 %v1337, 1.442695
  %v1339 = vpow.pop %v1338
  %v1340 = vsel %vm1333, %v1339, 0.0
  %1341 = vadd.xlane.f32.xlu0 %v1340
  %v1342 = vpop.xlane.xlu0 %1341
  %v1343 = vrcp.pop %v1342
  %v1344 = vmul.f32 %v1339, %v1343
  %1345 = vrot.lane.b32.xlu0 %v1252, 64
  %v1346 = vpop.permute.xlu0 %1345
  %vm1347 = vcmask 31744
  %v1349 = vsel %vm1347, %v1344, 0
  %vm1351 = vcmask 1043456
  %v1352 = vsel %vm1351, %v1346, 0
  %1354 = vmatprep.subr.mxu0 0.0
  %1355 = vmatpush1.msra.mxu0 0.0
  %1356 = vmatprep.subr.mxu0 0.0
  %1357 = vmatpush1.msra.mxu0 0.0
  %1358 = vmatprep.subr.mxu0 0.0
  %1359 = vmatpush1.msra.mxu0 0.0
  %1360 = vmatprep.subr.mxu0 0.0
  %1361 = vmatpush1.msra.mxu0 0.0
  %1362 = vmatprep.subr.mxu0 0.0
  %1363 = vmatpush1.msra.mxu0 0.0
  %1364 = vmatprep.subr.mxu0 0.0
  %1365 = vmatpush1.msra.mxu0 0.0
  %1366 = vmatprep.subr.mxu0 0.0
  %1367 = vmatpush1.msra.mxu0 0.0
  %1368 = vmatprep.subr.mxu0 0.0
  %1369 = vmatpush1.msra.mxu0 0.0
  %1370 = vmatprep.subr.mxu0 0.0
  %1371 = vmatpush1.msra.mxu0 0.0
  %1372 = vmatprep.subr.mxu0 0.0
  %1373 = vmatpush1.msra.mxu0 0.0
  %1374 = vmatprep.subr.mxu0 0.0
  %1375 = vmatpush1.msra.mxu0 0.0
  %1376 = vmatprep.subr.mxu0 0.0
  %1377 = vmatpush1.msra.mxu0 0.0
  %1378 = vmatprep.subr.mxu0 0.0
  %1379 = vmatpush1.msra.mxu0 0.0
  %1380 = vmatprep.subr.mxu0 0.0
  %1381 = vmatpush1.msra.mxu0 0.0
  %1382 = vmatprep.subr.mxu0 0.0
  %1383 = vmatpush1.msra.mxu0 0.0
  %1384 = vmatprep.subr.mxu0 0.0
  %1385 = vmatpush1.msra.mxu0 %v1352
  %1386 = vmatprep.subr.mxu0 0.0
  %1387 = vmatpush2.msra.mxu0 0.0
  %1388 = vmatprep.subr.mxu0 0.0
  %1389 = vmatpush2.msra.mxu0 0.0
  %1390 = vmatprep.subr.mxu0 0.0
  %1391 = vmatpush2.msra.mxu0 0.0
  %1392 = vmatprep.subr.mxu0 0.0
  %1393 = vmatpush2.msra.mxu0 0.0
  %1394 = vmatprep.subr.mxu0 0.0
  %1395 = vmatpush2.msra.mxu0 0.0
  %1396 = vmatprep.subr.mxu0 0.0
  %1397 = vmatpush2.msra.mxu0 0.0
  %1398 = vmatprep.subr.mxu0 0.0
  %1399 = vmatpush2.msra.mxu0 0.0
  %1400 = vmatprep.subr.mxu0 0.0
  %1401 = vmatpush2.msra.mxu0 0.0
  %1402 = vmatprep.subr.mxu0 0.0
  %1403 = vmatpush2.msra.mxu0 0.0
  %1404 = vmatprep.subr.mxu0 0.0
  %1405 = vmatpush2.msra.mxu0 0.0
  %1406 = vmatprep.subr.mxu0 0.0
  %1407 = vmatpush2.msra.mxu0 0.0
  %1408 = vmatprep.subr.mxu0 0.0
  %1409 = vmatpush2.msra.mxu0 0.0
  %1410 = vmatprep.subr.mxu0 0.0
  %1411 = vmatpush2.msra.mxu0 0.0
  %1412 = vmatprep.subr.mxu0 0.0
  %1413 = vmatpush2.msra.mxu0 0.0
  %1414 = vmatprep.subr.mxu0 0.0
  %1415 = vmatpush2.msra.mxu0 0.0
  %1416 = vmatprep.subr.mxu0 0.0
  %1417 = vmatpush2.msra.mxu0 0.0
  %1418 = vmatprep.mubr.f32.mxu0 0.0
  %1419 = vmatmul.mubr.f32.gmra.mxu0 %v1349
  %v1420 = vpop.f32.mrf.mxu0
  %v1421 = vadd.f32 0.0, %v1420
  %v1422 = vpop.f32.mrf.mxu0
  %1423 = vdwg.mxu0
  %v1424 = vld [vmem:[%s10] sm:$0xff]
  %v1425 = vld [vmem:[%s10 + $0x8] sm:$0xff]
  %v1426 = vld [vmem:[%s10 + $0x10] sm:$0xff]
  %v1427 = vld [vmem:[%s10 + $0x18] sm:$0xff]
  %v1428 = vld [vmem:[%s11] sm:$0x1]
  %v1430 = vlaneseq
  %v1431 = vshrl.u32 %v1430, 7
  %v1432 = vsub.s32 0, %v1431
  %v1433 = vrot.slane %v1428, %v1432
  %v1436 = vsel %vm1112, %v1421, 0
  %1438 = vmatprep.subr.mxu0 0.0
  %1439 = vmatpush1.msra.mxu0 0.0
  %1440 = vmatprep.subr.mxu0 0.0
  %1441 = vmatpush1.msra.mxu0 0.0
  %1442 = vmatprep.subr.mxu0 0.0
  %1443 = vmatpush1.msra.mxu0 0.0
  %1444 = vmatprep.subr.mxu0 0.0
  %1445 = vmatpush1.msra.mxu0 0.0
  %1446 = vmatprep.subr.mxu0 0.0
  %1447 = vmatpush1.msra.mxu0 0.0
  %1448 = vmatprep.subr.mxu0 0.0
  %1449 = vmatpush1.msra.mxu0 0.0
  %1450 = vmatprep.subr.mxu0 0.0
  %1451 = vmatpush1.msra.mxu0 0.0
  %1452 = vmatprep.subr.mxu0 0.0
  %1453 = vmatpush1.msra.mxu0 0.0
  %1454 = vmatprep.subr.mxu0 0.0
  %1455 = vmatpush1.msra.mxu0 0.0
  %1456 = vmatprep.subr.mxu0 0.0
  %1457 = vmatpush1.msra.mxu0 0.0
  %1458 = vmatprep.subr.mxu0 0.0
  %1459 = vmatpush1.msra.mxu0 0.0
  %1460 = vmatprep.subr.mxu0 0.0
  %1461 = vmatpush1.msra.mxu0 0.0
  %1462 = vmatprep.subr.mxu0 0.0
  %1463 = vmatpush1.msra.mxu0 %v1427
  %1464 = vmatprep.subr.mxu0 0.0
  %1465 = vmatpush1.msra.mxu0 %v1426
  %1466 = vmatprep.subr.mxu0 0.0
  %1467 = vmatpush1.msra.mxu0 %v1425
  %1468 = vmatprep.subr.mxu0 0.0
  %1469 = vmatpush1.msra.mxu0 %v1424
  %1470 = vmatprep.subr.mxu0 0.0
  %1471 = vmatpush2.msra.mxu0 0.0
  %1472 = vmatprep.subr.mxu0 0.0
  %1473 = vmatpush2.msra.mxu0 0.0
  %1474 = vmatprep.subr.mxu0 0.0
  %1475 = vmatpush2.msra.mxu0 0.0
  %1476 = vmatprep.subr.mxu0 0.0
  %1477 = vmatpush2.msra.mxu0 0.0
  %1478 = vmatprep.subr.mxu0 0.0
  %1479 = vmatpush2.msra.mxu0 0.0
  %1480 = vmatprep.subr.mxu0 0.0
  %1481 = vmatpush2.msra.mxu0 0.0
  %1482 = vmatprep.subr.mxu0 0.0
  %1483 = vmatpush2.msra.mxu0 0.0
  %1484 = vmatprep.subr.mxu0 0.0
  %1485 = vmatpush2.msra.mxu0 0.0
  %1486 = vmatprep.subr.mxu0 0.0
  %1487 = vmatpush2.msra.mxu0 0.0
  %1488 = vmatprep.subr.mxu0 0.0
  %1489 = vmatpush2.msra.mxu0 0.0
  %1490 = vmatprep.subr.mxu0 0.0
  %1491 = vmatpush2.msra.mxu0 0.0
  %1492 = vmatprep.subr.mxu0 0.0
  %1493 = vmatpush2.msra.mxu0 0.0
  %1494 = vmatprep.subr.mxu0 0.0
  %1495 = vmatpush2.msra.mxu0 0.0
  %1496 = vmatprep.subr.mxu0 0.0
  %1497 = vmatpush2.msra.mxu0 0.0
  %1498 = vmatprep.subr.mxu0 0.0
  %1499 = vmatpush2.msra.mxu0 0.0
  %1500 = vmatprep.subr.mxu0 0.0
  %1501 = vmatpush2.msra.mxu0 0.0
  %1502 = vmatprep.mubr.f32.mxu0 0.0
  %1503 = vmatmul.mubr.f32.gmra.mxu0 %v1436
  %v1504 = vpop.f32.mrf.mxu0
  %v1505 = vadd.f32 %v1433, %v1504
  %v1506 = vpop.f32.mrf.mxu0
  %1507 = vdwg.mxu0
  %v1508 = vadd.f32 %v1505, %v1177
  %vm1509 = vcmask 257024
  %v1510 = vsel %vm1509, %v1508, 0.0
  %1511 = vadd.xlane.f32.xlu0 %v1510
  %v1512 = vpop.xlane.xlu0 %1511
  %v1513 = vrcp.pop 32.0
  %v1514 = vmul.f32 %v1512, %v1513
  %v1515 = vsub.f32 %v1508, %v1514
  %v1516 = vmul.f32 %v1515, %v1515
  %v1517 = vsel %vm1509, %v1516, 0.0
  %1518 = vadd.xlane.f32.xlu0 %v1517
  %v1519 = vpop.xlane.xlu0 %1518
  %v1520 = vmul.f32 %v1519, %v1513
  %v1521 = vadd.f32 %v1520, 1e-05
  %v1522 = vrsqrt.pop %v1521
  %v1523 = vmul.f32 %v1515, %v1522
  %v1524 = vld [vmem:[%s12] sm:$0x1]
  %v1526 = vlaneseq
  %v1527 = vshrl.u32 %v1526, 7
  %v1528 = vsub.s32 0, %v1527
  %v1529 = vrot.slane %v1524, %v1528
  %v1531 = vmul.f32 %v1523, %v1529
  %v1532 = vld [vmem:[%s13] sm:$0x1]
  %v1534 = vlaneseq
  %v1535 = vshrl.u32 %v1534, 7
  %v1536 = vsub.s32 0, %v1535
  %v1537 = vrot.slane %v1532, %v1536
  %v1539 = vadd.f32 %v1531, %v1537
  %v1540 = vmul.f32 %v1172, %v1172
  %v1541 = vsel %vm1112, %v1540, 0.0
  %1542 = vadd.xlane.f32.xlu0 %v1541
  %v1543 = vpop.xlane.xlu0 %1542
  %v1544 = vmul.f32 %v1539, %v1539
  %v1545 = vsel %vm1509, %v1544, 0.0
  %1546 = vadd.xlane.f32.xlu0 %v1545
  %v1547 = vpop.xlane.xlu0 %1546
  %v1549 = vsel %vm1112, %v1172, 0
  %v1552 = vsel %vm1112, %v1539, 0
  %1554 = vmatprep.subr.mxu0 0.0
  %1555 = vmatpush1.xpose.msra.mxu0 0.0
  %1556 = vmatprep.subr.mxu0 0.0
  %1557 = vmatpush1.xpose.msra.mxu0 0.0
  %1558 = vmatprep.subr.mxu0 0.0
  %1559 = vmatpush1.xpose.msra.mxu0 0.0
  %1560 = vmatprep.subr.mxu0 0.0
  %1561 = vmatpush1.xpose.msra.mxu0 0.0
  %1562 = vmatprep.subr.mxu0 0.0
  %1563 = vmatpush1.xpose.msra.mxu0 0.0
  %1564 = vmatprep.subr.mxu0 0.0
  %1565 = vmatpush1.xpose.msra.mxu0 0.0
  %1566 = vmatprep.subr.mxu0 0.0
  %1567 = vmatpush1.xpose.msra.mxu0 0.0
  %1568 = vmatprep.subr.mxu0 0.0
  %1569 = vmatpush1.xpose.msra.mxu0 0.0
  %1570 = vmatprep.subr.mxu0 0.0
  %1571 = vmatpush1.xpose.msra.mxu0 0.0
  %1572 = vmatprep.subr.mxu0 0.0
  %1573 = vmatpush1.xpose.msra.mxu0 0.0
  %1574 = vmatprep.subr.mxu0 0.0
  %1575 = vmatpush1.xpose.msra.mxu0 0.0
  %1576 = vmatprep.subr.mxu0 0.0
  %1577 = vmatpush1.xpose.msra.mxu0 0.0
  %1578 = vmatprep.subr.mxu0 0.0
  %1579 = vmatpush1.xpose.msra.mxu0 0.0
  %1580 = vmatprep.subr.mxu0 0.0
  %1581 = vmatpush1.xpose.msra.mxu0 0.0
  %1582 = vmatprep.subr.mxu0 0.0
  %1583 = vmatpush1.xpose.msra.mxu0 0.0
  %1584 = vmatprep.subr.mxu0 0.0
  %1585 = vmatpush1.xpose.msra.mxu0 %v1552
  %1586 = vmatprep.subr.mxu0 0.0
  %1587 = vmatpush2.xpose.msra.mxu0 0.0
  %1588 = vmatprep.subr.mxu0 0.0
  %1589 = vmatpush2.xpose.msra.mxu0 0.0
  %1590 = vmatprep.subr.mxu0 0.0
  %1591 = vmatpush2.xpose.msra.mxu0 0.0
  %1592 = vmatprep.subr.mxu0 0.0
  %1593 = vmatpush2.xpose.msra.mxu0 0.0
  %1594 = vmatprep.subr.mxu0 0.0
  %1595 = vmatpush2.xpose.msra.mxu0 0.0
  %1596 = vmatprep.subr.mxu0 0.0
  %1597 = vmatpush2.xpose.msra.mxu0 0.0
  %1598 = vmatprep.subr.mxu0 0.0
  %1599 = vmatpush2.xpose.msra.mxu0 0.0
  %1600 = vmatprep.subr.mxu0 0.0
  %1601 = vmatpush2.xpose.msra.mxu0 0.0
  %1602 = vmatprep.subr.mxu0 0.0
  %1603 = vmatpush2.xpose.msra.mxu0 0.0
  %1604 = vmatprep.subr.mxu0 0.0
  %1605 = vmatpush2.xpose.msra.mxu0 0.0
  %1606 = vmatprep.subr.mxu0 0.0
  %1607 = vmatpush2.xpose.msra.mxu0 0.0
  %1608 = vmatprep.subr.mxu0 0.0
  %1609 = vmatpush2.xpose.msra.mxu0 0.0
  %1610 = vmatprep.subr.mxu0 0.0
  %1611 = vmatpush2.xpose.msra.mxu0 0.0
  %1612 = vmatprep.subr.mxu0 0.0
  %1613 = vmatpush2.xpose.msra.mxu0 0.0
  %1614 = vmatprep.subr.mxu0 0.0
  %1615 = vmatpush2.xpose.msra.mxu0 0.0
  %1616 = vmatprep.subr.mxu0 0.0
  %1617 = vmatpush2.xpose.msra.mxu0 0.0
  %1618 = vmatprep.mubr.f32.mxu0 0.0
  %1619 = vmatmul.mubr.f32.gmra.mxu0 %v1549
  %v1620 = vpop.f32.mrf.mxu0
  %v1621 = vadd.f32 0.0, %v1620
  %v1622 = vpop.f32.mrf.mxu0
  %1623 = vdwg.mxu0
  %vm1624 = vcmask 7168
  %v1626 = vsel %vm1624, 1.0, 0
  %v1629 = vsel %vm1624, %v1547, 0
  %1631 = vmatprep.subr.mxu0 0.0
  %1632 = vmatpush1.xpose.msra.mxu0 0.0
  %1633 = vmatprep.subr.mxu0 0.0
  %1634 = vmatpush1.xpose.msra.mxu0 0.0
  %1635 = vmatprep.subr.mxu0 0.0
  %1636 = vmatpush1.xpose.msra.mxu0 0.0
  %1637 = vmatprep.subr.mxu0 0.0
  %1638 = vmatpush1.xpose.msra.mxu0 0.0
  %1639 = vmatprep.subr.mxu0 0.0
  %1640 = vmatpush1.xpose.msra.mxu0 0.0
  %1641 = vmatprep.subr.mxu0 0.0
  %1642 = vmatpush1.xpose.msra.mxu0 0.0
  %1643 = vmatprep.subr.mxu0 0.0
  %1644 = vmatpush1.xpose.msra.mxu0 0.0
  %1645 = vmatprep.subr.mxu0 0.0
  %1646 = vmatpush1.xpose.msra.mxu0 0.0
  %1647 = vmatprep.subr.mxu0 0.0
  %1648 = vmatpush1.xpose.msra.mxu0 0.0
  %1649 = vmatprep.subr.mxu0 0.0
  %1650 = vmatpush1.xpose.msra.mxu0 0.0
  %1651 = vmatprep.subr.mxu0 0.0
  %1652 = vmatpush1.xpose.msra.mxu0 0.0
  %1653 = vmatprep.subr.mxu0 0.0
  %1654 = vmatpush1.xpose.msra.mxu0 0.0
  %1655 = vmatprep.subr.mxu0 0.0
  %1656 = vmatpush1.xpose.msra.mxu0 0.0
  %1657 = vmatprep.subr.mxu0 0.0
  %1658 = vmatpush1.xpose.msra.mxu0 0.0
  %1659 = vmatprep.subr.mxu0 0.0
  %1660 = vmatpush1.xpose.msra.mxu0 0.0
  %1661 = vmatprep.subr.mxu0 0.0
  %1662 = vmatpush1.xpose.msra.mxu0 %v1629
  %1663 = vmatprep.subr.mxu0 0.0
  %1664 = vmatpush2.xpose.msra.mxu0 0.0
  %1665 = vmatprep.subr.mxu0 0.0
  %1666 = vmatpush2.xpose.msra.mxu0 0.0
  %1667 = vmatprep.subr.mxu0 0.0
  %1668 = vmatpush2.xpose.msra.mxu0 0.0
  %1669 = vmatprep.subr.mxu0 0.0
  %1670 = vmatpush2.xpose.msra.mxu0 0.0
  %1671 = vmatprep.subr.mxu0 0.0
  %1672 = vmatpush2.xpose.msra.mxu0 0.0
  %1673 = vmatprep.subr.mxu0 0.0
  %1674 = vmatpush2.xpose.msra.mxu0 0.0
  %1675 = vmatprep.subr.mxu0 0.0
  %1676 = vmatpush2.xpose.msra.mxu0 0.0
  %1677 = vmatprep.subr.mxu0 0.0
  %1678 = vmatpush2.xpose.msra.mxu0 0.0
  %1679 = vmatprep.subr.mxu0 0.0
  %1680 = vmatpush2.xpose.msra.mxu0 0.0
  %1681 = vmatprep.subr.mxu0 0.0
  %1682 = vmatpush2.xpose.msra.mxu0 0.0
  %1683 = vmatprep.subr.mxu0 0.0
  %1684 = vmatpush2.xpose.msra.mxu0 0.0
  %1685 = vmatprep.subr.mxu0 0.0
  %1686 = vmatpush2.xpose.msra.mxu0 0.0
  %1687 = vmatprep.subr.mxu0 0.0
  %1688 = vmatpush2.xpose.msra.mxu0 0.0
  %1689 = vmatprep.subr.mxu0 0.0
  %1690 = vmatpush2.xpose.msra.mxu0 0.0
  %1691 = vmatprep.subr.mxu0 0.0
  %1692 = vmatpush2.xpose.msra.mxu0 0.0
  %1693 = vmatprep.subr.mxu0 0.0
  %1694 = vmatpush2.xpose.msra.mxu0 0.0
  %1695 = vmatprep.mubr.f32.mxu0 0.0
  %1696 = vmatmul.mubr.f32.gmra.mxu0 %v1626
  %v1697 = vpop.f32.mrf.mxu0
  %v1698 = vadd.f32 0.0, %v1697
  %v1699 = vpop.f32.mrf.mxu0
  %1700 = vdwg.mxu0
  %v1701 = vmul.f32 %v1621, 2.0
  %v1702 = vsub.f32 %v1543, %v1701
  %v1703 = vadd.f32 %v1702, %v1698
  %v1704 = vsub.f32 0.0, %v1703
  %v1705 = vmul.f32 %v1704, 0.0625
  %1706 = vst.msk [vmem:[%s14] sm:$0xff] %vm1347, %v1705
  // Predicated region
  $region58: #{feat_forward.1} parent=0 // pred_check
    _
  $region59: #{feat_forward.1} parent=0 // pred_check_branch
    %1708 = sbr.rel (0) target = $region61
  $region60: #{feat_forward.1} parent=0 // pred_region
    _
  $region61: #{feat_forward.1} parent=0 // pred_fallthru
    _
  // Predicated region
  $region62: #{feat_forward.1} parent=0 // pred_check
    _
  $region63: #{feat_forward.1} parent=0 // pred_check_branch
    %1710 = sbr.rel (0) target = $region65
  $region64: #{feat_forward.1} parent=0 // pred_region
    _
  $region65: #{feat_forward.1} parent=0 // pred_fallthru
    _

</llo_original>
